<compile_context>
chip_gen: v7x
topology: tpu7x:2x2x1
jax: 0.10.0
libtpu: 0.0.40
codegen_flags: <defaults>
</compile_context>

<pallas_src>
import functools
import math

import jax
import jax.numpy as jnp
from jax import lax
from jax.experimental import pallas as pl
from jax.experimental.pallas import tpu as pltpu


# ----------------------------------------------------------------------------
# Fused attention kernel: qkv proj + cgate + softmax attention + output proj
# ----------------------------------------------------------------------------
def _attention_fused_kernel(x_ref, wqkv_ref, *rest, num_heads, head_dim, scale,
                            has_qkv_bias):
    if has_qkv_bias:
        bqkv_ref, wg_ref, bg_ref, wproj_ref, bproj_ref, o_ref = rest
    else:
        wg_ref, bg_ref, wproj_ref, bproj_ref, o_ref = rest
        bqkv_ref = None

    C = num_heads * head_dim

    # qkv projection: (N, C) @ (C, 3C) -> (N, 3C) = [q | k | v], heads contiguous.
    qkv = jnp.dot(x_ref[...], wqkv_ref[...], preferred_element_type=jnp.float32)
    if bqkv_ref is not None:
        qkv = qkv + bqkv_ref[...]

    wg = wg_ref[...]                     # (3*hd, hd): row blocks = [q | k | v]
    bg = bg_ref[...]                     # (1, hd)
    wg_q = wg[:head_dim]
    wg_k = wg[head_dim:2 * head_dim]
    wg_v = wg[2 * head_dim:]

    out_cols = []
    for h in range(num_heads):           # static unroll over heads
        lo = h * head_dim
        hi = lo + head_dim
        q = qkv[:, lo:hi]                # (N, hd)
        k = qkv[:, C + lo:C + hi]
        v = qkv[:, 2 * C + lo:2 * C + hi]

        # cgate: sigmoid(cat([q,k,v]) @ Wg + bg) == sigmoid(q@Wg_q + k@Wg_k + v@Wg_v + bg)
        g = jnp.dot(q, wg_q, preferred_element_type=jnp.float32)
        g = g + jnp.dot(k, wg_k, preferred_element_type=jnp.float32)
        g = g + jnp.dot(v, wg_v, preferred_element_type=jnp.float32)
        g = jax.nn.sigmoid(g + bg)
        qg = g * q
        kg = g * k

        # attn = softmax(qg @ kg^T * scale); contraction expressed directly (no .T copy)
        s = lax.dot_general(
            qg, kg, (((1,), (1,)), ((), ())), preferred_element_type=jnp.float32
        ) * scale                                            # (N, N)
        m = jnp.max(s, axis=-1, keepdims=True)
        p = jnp.exp(s - m)
        denom = jnp.sum(p, axis=-1, keepdims=True)
        attn = p * pl.reciprocal(denom, approx=True)         # attn_drop = identity

        out_cols.append(jnp.dot(attn, v, preferred_element_type=jnp.float32))

    # Heads concatenated along lanes -> (N, C), already the channel order of
    # torch's transpose(1,2).reshape(B, N, C)  (channel = h * head_dim + d).
    attn_out = jnp.concatenate(out_cols, axis=-1)

    # Output projection (proj_drop = identity). Single lane-dense (N, C) store.
    out = jnp.dot(attn_out, wproj_ref[...], preferred_element_type=jnp.float32)
    out = out + bproj_ref[...]
    o_ref[...] = out.astype(o_ref.dtype)


def attention_forward(x, w_qkv, b_qkv, w_pgate, b_pgate, w_proj, b_proj,
                      *, num_heads, head_dim, scale):
    """x: (B, N, C) -> (B, N, C).  Weights stored as (in, out)."""
    B, N, C = x.shape
    has_qkv_bias = b_qkv is not None
    kernel = functools.partial(
        _attention_fused_kernel, num_heads=num_heads, head_dim=head_dim,
        scale=scale, has_qkv_bias=has_qkv_bias,
    )

    def _const(b):
        return (0, 0)

    in_specs = [
        pl.BlockSpec((None, N, C), lambda b: (b, 0, 0)),        # x, per-batch tile
        pl.BlockSpec((C, 3 * C), _const),                        # w_qkv (resident)
    ]
    args = [x, w_qkv]
    if has_qkv_bias:
        in_specs.append(pl.BlockSpec((1, 3 * C), _const))        # b_qkv
        args.append(b_qkv)
    in_specs += [
        pl.BlockSpec((3 * head_dim, head_dim), _const),          # w_pgate
        pl.BlockSpec((1, head_dim), _const),                     # b_pgate
        pl.BlockSpec((C, C), _const),                            # w_proj
        pl.BlockSpec((1, C), _const),                            # b_proj
    ]
    args += [w_pgate, b_pgate, w_proj, b_proj]

    return pl.pallas_call(
        kernel,
        out_shape=jax.ShapeDtypeStruct((B, N, C), x.dtype),
        grid=(B,),
        in_specs=in_specs,
        out_specs=pl.BlockSpec((None, N, C), lambda b: (b, 0, 0)),
        compiler_params=pltpu.CompilerParams(dimension_semantics=("parallel",)),
    )(*args)


# ----------------------------------------------------------------------------
# Module wrapper (parameter setup in plain JAX)
# ----------------------------------------------------------------------------
class AttentionPallas:
    def __init__(self, dim, num_heads=8, qkv_bias=False, qk_scale=None, key=None):
        assert dim % num_heads == 0
        self.dim = dim
        self.num_heads = num_heads
        self.head_dim = dim // num_heads
        self.scale = qk_scale if qk_scale is not None else self.head_dim ** (-0.5)
        if key is None:
            key = jax.random.PRNGKey(0)
        keys = jax.random.split(key, 6)

        def uni(k, shape, fan_in):
            bound = 1.0 / math.sqrt(fan_in)
            return jax.random.uniform(k, shape, jnp.float32, -bound, bound)

        # Weights stored as (in, out), i.e. transposed vs PyTorch's (out, in).
        self.w_qkv = uni(keys[0], (dim, 3 * dim), dim)
        self.b_qkv = uni(keys[1], (1, 3 * dim), dim) if qkv_bias else None
        self.w_proj = uni(keys[2], (dim, dim), dim)
        self.b_proj = uni(keys[3], (1, dim), dim)
        self.w_pgate = uni(keys[4], (3 * self.head_dim, self.head_dim), 3 * self.head_dim)
        self.b_pgate = uni(keys[5], (1, self.head_dim), 3 * self.head_dim)

    def __call__(self, x, num_frames, layer_idx=0, filename=None):
        del num_frames, layer_idx, filename   # unused by the reference forward
        return attention_forward(
            x, self.w_qkv, self.b_qkv, self.w_pgate, self.b_pgate,
            self.w_proj, self.b_proj,
            num_heads=self.num_heads, head_dim=self.head_dim, scale=self.scale,
        )


# ----------------------------------------------------------------------------
# Pure-JAX reference (mirrors the PyTorch forward) for validation
# ----------------------------------------------------------------------------
def reference_forward(mod, x):
    B, N, C = x.shape
    H, hd = mod.num_heads, mod.head_dim
    qkv = x.reshape(B * N, C) @ mod.w_qkv
    if mod.b_qkv is not None:
        qkv = qkv + mod.b_qkv
    qkv = qkv.reshape(B, N, 3, H, hd).transpose(2, 0, 3, 1, 4)          # (3,B,H,N,hd)
    q, k, v = qkv[0], qkv[1], qkv[2]
    qk = jnp.concatenate([q, k, v], axis=3)                             # (B,H,N,3hd)
    gate = jax.nn.sigmoid(qk @ mod.w_pgate + mod.b_pgate)               # (B,H,N,hd)
    q = gate * q
    k = gate * k
    attn = jax.nn.softmax(
        jnp.einsum("bhne,bhme->bhnm", q, k) * mod.scale, axis=-1)
    out = jnp.einsum("bhnm,bhme->bhne", attn, v)                        # (B,H,N,hd)
    out = out.transpose(0, 2, 1, 3).reshape(B, N, C)
    out = out.reshape(B * N, C) @ mod.w_proj + mod.b_proj
    return out.reshape(B, N, C)


if __name__ == "__main__":
    key = jax.random.PRNGKey(0)
    k_param, k_x = jax.random.split(key)

    dim = 64
    num_heads = 4
    B = 2
    N = 16
    num_frames = 2    # accepted by forward but unused (matches the PyTorch module)

    mod = AttentionPallas(dim, num_heads=num_heads, qkv_bias=False, key=k_param)
    x = jax.random.normal(k_x, (B, N, dim), jnp.float32)

    out = jax.block_until_ready(mod(x, num_frames))
    ref = jax.block_until_ready(reference_forward(mod, x))

    assert out.shape == (B, N, dim)
    max_err = float(jnp.max(jnp.abs(out - ref)))
    assert jnp.allclose(out, ref, atol=2e-3, rtol=2e-3), (
        f"mismatch vs reference: max abs err {max_err:.3e}")

    print("KERNEL_OK")
</pallas_src>

<mosaic_0001>
module attributes {stable_mosaic.version = 11 : i64} {
  func.func @_attention_fused_kernel(%arg0: i32, %arg1: memref<1x16x64xf32, #tpu.memory_space<vmem>>, %arg2: memref<64x192xf32, #tpu.memory_space<vmem>>, %arg3: memref<48x16xf32, #tpu.memory_space<vmem>>, %arg4: memref<1x16xf32, #tpu.memory_space<vmem>>, %arg5: memref<64x64xf32, #tpu.memory_space<vmem>>, %arg6: memref<1x64xf32, #tpu.memory_space<vmem>>, %arg7: memref<1x16x64xf32, #tpu.memory_space<vmem>>) attributes {dimension_semantics = [#tpu.dimension_semantics<parallel>], iteration_bounds = array<i64: 2>, scalar_prefetch = 0 : i64, scratch_operands = 0 : i64, tpu.core_type = #tpu.core_type<tc>, window_params = [{transform_indices = @transform_0, window_bounds = array<i64: 1, 16, 64>}, {pipeline_mode = #tpu.pipeline_mode<synchronous>, transform_indices = @transform_1, window_bounds = array<i64: 64, 192>}, {pipeline_mode = #tpu.pipeline_mode<synchronous>, transform_indices = @transform_2, window_bounds = array<i64: 48, 16>}, {pipeline_mode = #tpu.pipeline_mode<synchronous>, transform_indices = @transform_3, window_bounds = array<i64: 1, 16>}, {pipeline_mode = #tpu.pipeline_mode<synchronous>, transform_indices = @transform_4, window_bounds = array<i64: 64, 64>}, {pipeline_mode = #tpu.pipeline_mode<synchronous>, transform_indices = @transform_5, window_bounds = array<i64: 1, 64>}, {transform_indices = @transform_6, window_bounds = array<i64: 1, 16, 64>}]} {
    %c0 = arith.constant 0 : index
    %c0_0 = arith.constant 0 : index
    %c0_1 = arith.constant 0 : index
    %0 = vector.load %arg1[%c0, %c0_0, %c0_1] : memref<1x16x64xf32, #tpu.memory_space<vmem>>, vector<1x16x64xf32>
    %1 = vector.shape_cast %0 : vector<1x16x64xf32> to vector<16x64xf32>
    %c0_2 = arith.constant 0 : index
    %c0_3 = arith.constant 0 : index
    %2 = vector.load %arg2[%c0_2, %c0_3] : memref<64x192xf32, #tpu.memory_space<vmem>>, vector<64x192xf32>
    %cst = arith.constant dense<0.000000e+00> : vector<16x192xf32>
    %3 = tpu.matmul %1, %2, %cst {dimension_numbers = #tpu.dot_dimension_numbers<[1], [0], [0], [1], [0, 0, 1, 1], [], []>} : vector<16x64xf32>, vector<64x192xf32>, vector<16x192xf32> -> vector<16x192xf32>
    %c0_4 = arith.constant 0 : index
    %c0_5 = arith.constant 0 : index
    %4 = vector.load %arg3[%c0_4, %c0_5] : memref<48x16xf32, #tpu.memory_space<vmem>>, vector<48x16xf32>
    %c0_6 = arith.constant 0 : index
    %c0_7 = arith.constant 0 : index
    %5 = vector.load %arg4[%c0_6, %c0_7] : memref<1x16xf32, #tpu.memory_space<vmem>>, vector<1x16xf32>
    %6 = vector.extract_strided_slice %4 {offsets = [0, 0], sizes = [16, 16], strides = [1, 1]} : vector<48x16xf32> to vector<16x16xf32>
    %7 = vector.extract_strided_slice %4 {offsets = [16, 0], sizes = [16, 16], strides = [1, 1]} : vector<48x16xf32> to vector<16x16xf32>
    %8 = vector.extract_strided_slice %4 {offsets = [32, 0], sizes = [16, 16], strides = [1, 1]} : vector<48x16xf32> to vector<16x16xf32>
    %9 = vector.extract_strided_slice %3 {offsets = [0, 0], sizes = [16, 16], strides = [1, 1]} : vector<16x192xf32> to vector<16x16xf32>
    %10 = vector.extract_strided_slice %3 {offsets = [0, 64], sizes = [16, 16], strides = [1, 1]} : vector<16x192xf32> to vector<16x16xf32>
    %11 = vector.extract_strided_slice %3 {offsets = [0, 128], sizes = [16, 16], strides = [1, 1]} : vector<16x192xf32> to vector<16x16xf32>
    %cst_8 = arith.constant dense<0.000000e+00> : vector<16x16xf32>
    %12 = tpu.matmul %9, %6, %cst_8 {dimension_numbers = #tpu.dot_dimension_numbers<[1], [0], [0], [1], [0, 0, 1, 1], [], []>} : vector<16x16xf32>, vector<16x16xf32>, vector<16x16xf32> -> vector<16x16xf32>
    %cst_9 = arith.constant dense<0.000000e+00> : vector<16x16xf32>
    %13 = tpu.matmul %10, %7, %cst_9 {dimension_numbers = #tpu.dot_dimension_numbers<[1], [0], [0], [1], [0, 0, 1, 1], [], []>} : vector<16x16xf32>, vector<16x16xf32>, vector<16x16xf32> -> vector<16x16xf32>
    %14 = arith.addf %12, %13 : vector<16x16xf32>
    %cst_10 = arith.constant dense<0.000000e+00> : vector<16x16xf32>
    %15 = tpu.matmul %11, %8, %cst_10 {dimension_numbers = #tpu.dot_dimension_numbers<[1], [0], [0], [1], [0, 0, 1, 1], [], []>} : vector<16x16xf32>, vector<16x16xf32>, vector<16x16xf32> -> vector<16x16xf32>
    %16 = arith.addf %14, %15 : vector<16x16xf32>
    %17 = vector.broadcast %5 : vector<1x16xf32> to vector<16x16xf32>
    %18 = arith.addf %16, %17 : vector<16x16xf32>
    %19 = arith.negf %18 : vector<16x16xf32>
    %20 = math.exp %19 : vector<16x16xf32>
    %cst_11 = arith.constant 1.000000e+00 : f32
    %21 = vector.broadcast %cst_11 : f32 to vector<16x16xf32>
    %22 = arith.addf %21, %20 : vector<16x16xf32>
    %23 = arith.divf %21, %22 : vector<16x16xf32>
    %24 = arith.mulf %23, %9 : vector<16x16xf32>
    %25 = arith.mulf %23, %10 : vector<16x16xf32>
    %cst_12 = arith.constant dense<0.000000e+00> : vector<16x16xf32>
    %26 = tpu.matmul %24, %25, %cst_12 {dimension_numbers = #tpu.dot_dimension_numbers<[1], [1], [0], [0], [0, 0, 1, 0], [], []>} : vector<16x16xf32>, vector<16x16xf32>, vector<16x16xf32> -> vector<16x16xf32>
    %cst_13 = arith.constant 2.500000e-01 : f32
    %27 = vector.broadcast %cst_13 : f32 to vector<16x16xf32>
    %28 = arith.mulf %26, %27 : vector<16x16xf32>
    %cst_14 = arith.constant dense<0xFF800000> : vector<16xf32>
    %29 = vector.multi_reduction <maximumf>, %28, %cst_14 [1] : vector<16x16xf32> to vector<16xf32>
    %30 = vector.shape_cast %29 : vector<16xf32> to vector<16x1xf32>
    %31 = vector.broadcast %30 : vector<16x1xf32> to vector<16x16xf32>
    %32 = arith.subf %28, %31 : vector<16x16xf32>
    %33 = math.exp %32 : vector<16x16xf32>
    %cst_15 = arith.constant dense<0.000000e+00> : vector<16xf32>
    %34 = vector.multi_reduction <add>, %33, %cst_15 [1] : vector<16x16xf32> to vector<16xf32>
    %35 = vector.shape_cast %34 : vector<16xf32> to vector<16x1xf32>
    %36 = tpu.reciprocal %35 {approx = true} : vector<16x1xf32> -> vector<16x1xf32>
    %37 = vector.broadcast %36 : vector<16x1xf32> to vector<16x16xf32>
    %38 = arith.mulf %33, %37 : vector<16x16xf32>
    %cst_16 = arith.constant dense<0.000000e+00> : vector<16x16xf32>
    %39 = tpu.matmul %38, %11, %cst_16 {dimension_numbers = #tpu.dot_dimension_numbers<[1], [0], [0], [1], [0, 0, 1, 1], [], []>} : vector<16x16xf32>, vector<16x16xf32>, vector<16x16xf32> -> vector<16x16xf32>
    %40 = vector.extract_strided_slice %3 {offsets = [0, 16], sizes = [16, 16], strides = [1, 1]} : vector<16x192xf32> to vector<16x16xf32>
    %41 = vector.extract_strided_slice %3 {offsets = [0, 80], sizes = [16, 16], strides = [1, 1]} : vector<16x192xf32> to vector<16x16xf32>
    %42 = vector.extract_strided_slice %3 {offsets = [0, 144], sizes = [16, 16], strides = [1, 1]} : vector<16x192xf32> to vector<16x16xf32>
    %cst_17 = arith.constant dense<0.000000e+00> : vector<16x16xf32>
    %43 = tpu.matmul %40, %6, %cst_17 {dimension_numbers = #tpu.dot_dimension_numbers<[1], [0], [0], [1], [0, 0, 1, 1], [], []>} : vector<16x16xf32>, vector<16x16xf32>, vector<16x16xf32> -> vector<16x16xf32>
    %cst_18 = arith.constant dense<0.000000e+00> : vector<16x16xf32>
    %44 = tpu.matmul %41, %7, %cst_18 {dimension_numbers = #tpu.dot_dimension_numbers<[1], [0], [0], [1], [0, 0, 1, 1], [], []>} : vector<16x16xf32>, vector<16x16xf32>, vector<16x16xf32> -> vector<16x16xf32>
    %45 = arith.addf %43, %44 : vector<16x16xf32>
    %cst_19 = arith.constant dense<0.000000e+00> : vector<16x16xf32>
    %46 = tpu.matmul %42, %8, %cst_19 {dimension_numbers = #tpu.dot_dimension_numbers<[1], [0], [0], [1], [0, 0, 1, 1], [], []>} : vector<16x16xf32>, vector<16x16xf32>, vector<16x16xf32> -> vector<16x16xf32>
    %47 = arith.addf %45, %46 : vector<16x16xf32>
    %48 = vector.broadcast %5 : vector<1x16xf32> to vector<16x16xf32>
    %49 = arith.addf %47, %48 : vector<16x16xf32>
    %50 = arith.negf %49 : vector<16x16xf32>
    %51 = math.exp %50 : vector<16x16xf32>
    %cst_20 = arith.constant 1.000000e+00 : f32
    %52 = vector.broadcast %cst_20 : f32 to vector<16x16xf32>
    %53 = arith.addf %52, %51 : vector<16x16xf32>
    %54 = arith.divf %52, %53 : vector<16x16xf32>
    %55 = arith.mulf %54, %40 : vector<16x16xf32>
    %56 = arith.mulf %54, %41 : vector<16x16xf32>
    %cst_21 = arith.constant dense<0.000000e+00> : vector<16x16xf32>
    %57 = tpu.matmul %55, %56, %cst_21 {dimension_numbers = #tpu.dot_dimension_numbers<[1], [1], [0], [0], [0, 0, 1, 0], [], []>} : vector<16x16xf32>, vector<16x16xf32>, vector<16x16xf32> -> vector<16x16xf32>
    %cst_22 = arith.constant 2.500000e-01 : f32
    %58 = vector.broadcast %cst_22 : f32 to vector<16x16xf32>
    %59 = arith.mulf %57, %58 : vector<16x16xf32>
    %cst_23 = arith.constant dense<0xFF800000> : vector<16xf32>
    %60 = vector.multi_reduction <maximumf>, %59, %cst_23 [1] : vector<16x16xf32> to vector<16xf32>
    %61 = vector.shape_cast %60 : vector<16xf32> to vector<16x1xf32>
    %62 = vector.broadcast %61 : vector<16x1xf32> to vector<16x16xf32>
    %63 = arith.subf %59, %62 : vector<16x16xf32>
    %64 = math.exp %63 : vector<16x16xf32>
    %cst_24 = arith.constant dense<0.000000e+00> : vector<16xf32>
    %65 = vector.multi_reduction <add>, %64, %cst_24 [1] : vector<16x16xf32> to vector<16xf32>
    %66 = vector.shape_cast %65 : vector<16xf32> to vector<16x1xf32>
    %67 = tpu.reciprocal %66 {approx = true} : vector<16x1xf32> -> vector<16x1xf32>
    %68 = vector.broadcast %67 : vector<16x1xf32> to vector<16x16xf32>
    %69 = arith.mulf %64, %68 : vector<16x16xf32>
    %cst_25 = arith.constant dense<0.000000e+00> : vector<16x16xf32>
    %70 = tpu.matmul %69, %42, %cst_25 {dimension_numbers = #tpu.dot_dimension_numbers<[1], [0], [0], [1], [0, 0, 1, 1], [], []>} : vector<16x16xf32>, vector<16x16xf32>, vector<16x16xf32> -> vector<16x16xf32>
    %71 = vector.extract_strided_slice %3 {offsets = [0, 32], sizes = [16, 16], strides = [1, 1]} : vector<16x192xf32> to vector<16x16xf32>
    %72 = vector.extract_strided_slice %3 {offsets = [0, 96], sizes = [16, 16], strides = [1, 1]} : vector<16x192xf32> to vector<16x16xf32>
    %73 = vector.extract_strided_slice %3 {offsets = [0, 160], sizes = [16, 16], strides = [1, 1]} : vector<16x192xf32> to vector<16x16xf32>
    %cst_26 = arith.constant dense<0.000000e+00> : vector<16x16xf32>
    %74 = tpu.matmul %71, %6, %cst_26 {dimension_numbers = #tpu.dot_dimension_numbers<[1], [0], [0], [1], [0, 0, 1, 1], [], []>} : vector<16x16xf32>, vector<16x16xf32>, vector<16x16xf32> -> vector<16x16xf32>
    %cst_27 = arith.constant dense<0.000000e+00> : vector<16x16xf32>
    %75 = tpu.matmul %72, %7, %cst_27 {dimension_numbers = #tpu.dot_dimension_numbers<[1], [0], [0], [1], [0, 0, 1, 1], [], []>} : vector<16x16xf32>, vector<16x16xf32>, vector<16x16xf32> -> vector<16x16xf32>
    %76 = arith.addf %74, %75 : vector<16x16xf32>
    %cst_28 = arith.constant dense<0.000000e+00> : vector<16x16xf32>
    %77 = tpu.matmul %73, %8, %cst_28 {dimension_numbers = #tpu.dot_dimension_numbers<[1], [0], [0], [1], [0, 0, 1, 1], [], []>} : vector<16x16xf32>, vector<16x16xf32>, vector<16x16xf32> -> vector<16x16xf32>
    %78 = arith.addf %76, %77 : vector<16x16xf32>
    %79 = vector.broadcast %5 : vector<1x16xf32> to vector<16x16xf32>
    %80 = arith.addf %78, %79 : vector<16x16xf32>
    %81 = arith.negf %80 : vector<16x16xf32>
    %82 = math.exp %81 : vector<16x16xf32>
    %cst_29 = arith.constant 1.000000e+00 : f32
    %83 = vector.broadcast %cst_29 : f32 to vector<16x16xf32>
    %84 = arith.addf %83, %82 : vector<16x16xf32>
    %85 = arith.divf %83, %84 : vector<16x16xf32>
    %86 = arith.mulf %85, %71 : vector<16x16xf32>
    %87 = arith.mulf %85, %72 : vector<16x16xf32>
    %cst_30 = arith.constant dense<0.000000e+00> : vector<16x16xf32>
    %88 = tpu.matmul %86, %87, %cst_30 {dimension_numbers = #tpu.dot_dimension_numbers<[1], [1], [0], [0], [0, 0, 1, 0], [], []>} : vector<16x16xf32>, vector<16x16xf32>, vector<16x16xf32> -> vector<16x16xf32>
    %cst_31 = arith.constant 2.500000e-01 : f32
    %89 = vector.broadcast %cst_31 : f32 to vector<16x16xf32>
    %90 = arith.mulf %88, %89 : vector<16x16xf32>
    %cst_32 = arith.constant dense<0xFF800000> : vector<16xf32>
    %91 = vector.multi_reduction <maximumf>, %90, %cst_32 [1] : vector<16x16xf32> to vector<16xf32>
    %92 = vector.shape_cast %91 : vector<16xf32> to vector<16x1xf32>
    %93 = vector.broadcast %92 : vector<16x1xf32> to vector<16x16xf32>
    %94 = arith.subf %90, %93 : vector<16x16xf32>
    %95 = math.exp %94 : vector<16x16xf32>
    %cst_33 = arith.constant dense<0.000000e+00> : vector<16xf32>
    %96 = vector.multi_reduction <add>, %95, %cst_33 [1] : vector<16x16xf32> to vector<16xf32>
    %97 = vector.shape_cast %96 : vector<16xf32> to vector<16x1xf32>
    %98 = tpu.reciprocal %97 {approx = true} : vector<16x1xf32> -> vector<16x1xf32>
    %99 = vector.broadcast %98 : vector<16x1xf32> to vector<16x16xf32>
    %100 = arith.mulf %95, %99 : vector<16x16xf32>
    %cst_34 = arith.constant dense<0.000000e+00> : vector<16x16xf32>
    %101 = tpu.matmul %100, %73, %cst_34 {dimension_numbers = #tpu.dot_dimension_numbers<[1], [0], [0], [1], [0, 0, 1, 1], [], []>} : vector<16x16xf32>, vector<16x16xf32>, vector<16x16xf32> -> vector<16x16xf32>
    %102 = vector.extract_strided_slice %3 {offsets = [0, 48], sizes = [16, 16], strides = [1, 1]} : vector<16x192xf32> to vector<16x16xf32>
    %103 = vector.extract_strided_slice %3 {offsets = [0, 112], sizes = [16, 16], strides = [1, 1]} : vector<16x192xf32> to vector<16x16xf32>
    %104 = vector.extract_strided_slice %3 {offsets = [0, 176], sizes = [16, 16], strides = [1, 1]} : vector<16x192xf32> to vector<16x16xf32>
    %cst_35 = arith.constant dense<0.000000e+00> : vector<16x16xf32>
    %105 = tpu.matmul %102, %6, %cst_35 {dimension_numbers = #tpu.dot_dimension_numbers<[1], [0], [0], [1], [0, 0, 1, 1], [], []>} : vector<16x16xf32>, vector<16x16xf32>, vector<16x16xf32> -> vector<16x16xf32>
    %cst_36 = arith.constant dense<0.000000e+00> : vector<16x16xf32>
    %106 = tpu.matmul %103, %7, %cst_36 {dimension_numbers = #tpu.dot_dimension_numbers<[1], [0], [0], [1], [0, 0, 1, 1], [], []>} : vector<16x16xf32>, vector<16x16xf32>, vector<16x16xf32> -> vector<16x16xf32>
    %107 = arith.addf %105, %106 : vector<16x16xf32>
    %cst_37 = arith.constant dense<0.000000e+00> : vector<16x16xf32>
    %108 = tpu.matmul %104, %8, %cst_37 {dimension_numbers = #tpu.dot_dimension_numbers<[1], [0], [0], [1], [0, 0, 1, 1], [], []>} : vector<16x16xf32>, vector<16x16xf32>, vector<16x16xf32> -> vector<16x16xf32>
    %109 = arith.addf %107, %108 : vector<16x16xf32>
    %110 = vector.broadcast %5 : vector<1x16xf32> to vector<16x16xf32>
    %111 = arith.addf %109, %110 : vector<16x16xf32>
    %112 = arith.negf %111 : vector<16x16xf32>
    %113 = math.exp %112 : vector<16x16xf32>
    %cst_38 = arith.constant 1.000000e+00 : f32
    %114 = vector.broadcast %cst_38 : f32 to vector<16x16xf32>
    %115 = arith.addf %114, %113 : vector<16x16xf32>
    %116 = arith.divf %114, %115 : vector<16x16xf32>
    %117 = arith.mulf %116, %102 : vector<16x16xf32>
    %118 = arith.mulf %116, %103 : vector<16x16xf32>
    %cst_39 = arith.constant dense<0.000000e+00> : vector<16x16xf32>
    %119 = tpu.matmul %117, %118, %cst_39 {dimension_numbers = #tpu.dot_dimension_numbers<[1], [1], [0], [0], [0, 0, 1, 0], [], []>} : vector<16x16xf32>, vector<16x16xf32>, vector<16x16xf32> -> vector<16x16xf32>
    %cst_40 = arith.constant 2.500000e-01 : f32
    %120 = vector.broadcast %cst_40 : f32 to vector<16x16xf32>
    %121 = arith.mulf %119, %120 : vector<16x16xf32>
    %cst_41 = arith.constant dense<0xFF800000> : vector<16xf32>
    %122 = vector.multi_reduction <maximumf>, %121, %cst_41 [1] : vector<16x16xf32> to vector<16xf32>
    %123 = vector.shape_cast %122 : vector<16xf32> to vector<16x1xf32>
    %124 = vector.broadcast %123 : vector<16x1xf32> to vector<16x16xf32>
    %125 = arith.subf %121, %124 : vector<16x16xf32>
    %126 = math.exp %125 : vector<16x16xf32>
    %cst_42 = arith.constant dense<0.000000e+00> : vector<16xf32>
    %127 = vector.multi_reduction <add>, %126, %cst_42 [1] : vector<16x16xf32> to vector<16xf32>
    %128 = vector.shape_cast %127 : vector<16xf32> to vector<16x1xf32>
    %129 = tpu.reciprocal %128 {approx = true} : vector<16x1xf32> -> vector<16x1xf32>
    %130 = vector.broadcast %129 : vector<16x1xf32> to vector<16x16xf32>
    %131 = arith.mulf %126, %130 : vector<16x16xf32>
    %cst_43 = arith.constant dense<0.000000e+00> : vector<16x16xf32>
    %132 = tpu.matmul %131, %104, %cst_43 {dimension_numbers = #tpu.dot_dimension_numbers<[1], [0], [0], [1], [0, 0, 1, 1], [], []>} : vector<16x16xf32>, vector<16x16xf32>, vector<16x16xf32> -> vector<16x16xf32>
    %133 = tpu.concatenate %39, %70, %101, %132 in 1 : vector<16x16xf32>, vector<16x16xf32>, vector<16x16xf32>, vector<16x16xf32> -> vector<16x64xf32>
    %c0_44 = arith.constant 0 : index
    %c0_45 = arith.constant 0 : index
    %134 = vector.load %arg5[%c0_44, %c0_45] : memref<64x64xf32, #tpu.memory_space<vmem>>, vector<64x64xf32>
    %cst_46 = arith.constant dense<0.000000e+00> : vector<16x64xf32>
    %135 = tpu.matmul %133, %134, %cst_46 {dimension_numbers = #tpu.dot_dimension_numbers<[1], [0], [0], [1], [0, 0, 1, 1], [], []>} : vector<16x64xf32>, vector<64x64xf32>, vector<16x64xf32> -> vector<16x64xf32>
    %c0_47 = arith.constant 0 : index
    %c0_48 = arith.constant 0 : index
    %136 = vector.load %arg6[%c0_47, %c0_48] : memref<1x64xf32, #tpu.memory_space<vmem>>, vector<1x64xf32>
    %137 = vector.broadcast %136 : vector<1x64xf32> to vector<16x64xf32>
    %138 = arith.addf %135, %137 : vector<16x64xf32>
    %c0_49 = arith.constant 0 : index
    %c0_50 = arith.constant 0 : index
    %c0_51 = arith.constant 0 : index
    %139 = vector.load %arg7[%c0_49, %c0_50, %c0_51] : memref<1x16x64xf32, #tpu.memory_space<vmem>>, vector<1x16x64xf32>
    %140 = vector.shape_cast %139 : vector<1x16x64xf32> to vector<16x64xf32>
    %141 = vector.shape_cast %138 : vector<16x64xf32> to vector<1x16x64xf32>
    tpu.vector_store %arg7[%c0_49, %c0_50, %c0_51], %141 {strides = array<i32>} : memref<1x16x64xf32, #tpu.memory_space<vmem>>, vector<1x16x64xf32>,
    return
  }
  func.func @transform_0(%arg0: i32) -> (i32, i32, i32) {
    %c0_i32 = arith.constant 0 : i32
    %c0_i32_0 = arith.constant 0 : i32
    %c0_i32_1 = arith.constant 0 : i32
    return %arg0, %c0_i32, %c0_i32_0 : i32, i32, i32
  }
  func.func @transform_1(%arg0: i32) -> (i32, i32) {
    %c0_i32 = arith.constant 0 : i32
    %c0_i32_0 = arith.constant 0 : i32
    %c0_i32_1 = arith.constant 0 : i32
    return %c0_i32, %c0_i32_0 : i32, i32
  }
  func.func @transform_2(%arg0: i32) -> (i32, i32) {
    %c0_i32 = arith.constant 0 : i32
    %c0_i32_0 = arith.constant 0 : i32
    %c0_i32_1 = arith.constant 0 : i32
    return %c0_i32, %c0_i32_0 : i32, i32
  }
  func.func @transform_3(%arg0: i32) -> (i32, i32) {
    %c0_i32 = arith.constant 0 : i32
    %c0_i32_0 = arith.constant 0 : i32
    %c0_i32_1 = arith.constant 0 : i32
    return %c0_i32, %c0_i32_0 : i32, i32
  }
  func.func @transform_4(%arg0: i32) -> (i32, i32) {
    %c0_i32 = arith.constant 0 : i32
    %c0_i32_0 = arith.constant 0 : i32
    %c0_i32_1 = arith.constant 0 : i32
    return %c0_i32, %c0_i32_0 : i32, i32
  }
  func.func @transform_5(%arg0: i32) -> (i32, i32) {
    %c0_i32 = arith.constant 0 : i32
    %c0_i32_0 = arith.constant 0 : i32
    %c0_i32_1 = arith.constant 0 : i32
    return %c0_i32, %c0_i32_0 : i32, i32
  }
  func.func @transform_6(%arg0: i32) -> (i32, i32, i32) {
    %c0_i32 = arith.constant 0 : i32
    %c0_i32_0 = arith.constant 0 : i32
    %c0_i32_1 = arith.constant 0 : i32
    return %arg0, %c0_i32, %c0_i32_0 : i32, i32, i32
  }
}

</mosaic_0001>

<llo_original>
// kernel: tpu_custom_call.1
$region0: #{tpu_custom_call.1}
  #allocation0 [shape = 'u32[]', space=smem, size = 0x4, offset = 0x4, fixed_abs, tag = 'smem constant byte address 0x4 - core index']
  #allocation1 [shape = 'u32[144,128]{1,0:T(1,128)}', space=vmem, size = 0x12000, scoped, tag = 'internal scratch']
  %s0 = inlined_call_operand.hbm [shape: f32[2,16,64], index: 0, kind: input, shape index: {}]
  %s1 = inlined_call_operand.hbm [shape: f32[64,192], index: 1, kind: input, shape index: {}]
  %s2 = inlined_call_operand.vmem [shape: f32[48,16], index: 2, kind: input, shape index: {}]
  %s3 = inlined_call_operand.vmem [shape: f32[1,16], index: 3, kind: input, shape index: {}]
  %s4 = inlined_call_operand.vmem [shape: f32[64,64], index: 4, kind: input, shape index: {}]
  %s5 = inlined_call_operand.vmem [shape: f32[1,64], index: 5, kind: input, shape index: {}]
  %s6 = inlined_call_operand.hbm [shape: f32[2,16,64], index: 6, kind: output, shape index: {}]
  %s7 = sld [smem:[#allocation0]]
  $region65: #{tpu_custom_call.1} parent=0
    _
  %s9 = ssub.s32 1, %s7
  %s10 = scalar_select 0, %s9, %s7
  $region1: #{tpu_custom_call.1} parent=0
    #allocation2 [shape = 'u8[16384]{0}', space=vmem, size = 0x4000, scoped, tag = 'input window, operand 0']
    #allocation3 [shape = 's32[2]{0}', space=sflag, size = 0x8, scoped, tag = 'scoped memory for tpu_custom_call.1']
    #allocation4 [shape = 's32[2]{0}', space=sflag, size = 0x8, scoped, tag = 'scoped memory for tpu_custom_call.1']
    #allocation5 [shape = 'u8[65536]{0}', space=vmem, size = 0x10000, scoped, tag = 'input window, operand 1, single buffered']
    #allocation6 [shape = 's32[1]{0}', space=sflag, size = 0x4, scoped, tag = 'scoped memory for tpu_custom_call.1']
    #allocation7 [shape = 'u8[16384]{0}', space=vmem, size = 0x4000, scoped, tag = 'output window, operand 0']
    %11 = vsyncpa [#allocation3], 0
    %s12 = scalar_lea.sflag [#allocation3], 1
    %13 = vsyncpa %s12, 0
    %14 = vsyncpa [#allocation6], 0
    %15 = vsyncpa [#allocation4], 0
    %s16 = scalar_lea.sflag [#allocation4], 1
    %17 = vsyncpa %s16, 0
    loop: start=0, step=1, limit=4
    $region2: #{tpu_custom_call.1} parent=1 // loop_pre_header
      _
    $region3: #{tpu_custom_call.1} parent=1 // loop_header
      %s19 = sphi 0, %s23
      %p20 = scmp.ge.s32.totalorder %s19, 4
      %s29 = sphi 0, %s31
      %s32 = sphi 0, %s29
      %s33 = sphi 0, %s32
      %s49 = sphi 0, %s33
      %s53 = sphi 0, %s53
      %s55 = sphi 0, %s53
      %s56 = sphi 0, %s55
      %s70 = sphi 0, %s56
      %s74 = sphi 0, %s74
      %s76 = sphi 0, %s74
      %s77 = sphi 0, %s76
      %s91 = sphi 0, %s77
      %s95 = sphi 0, %s95
      %s97 = sphi 0, %s95
      %s98 = sphi 0, %s97
      %s112 = sphi 0, %s98
      %s116 = sphi 0, %s116
      %s118 = sphi 0, %s116
      %s119 = sphi 0, %s118
      %s133 = sphi 0, %s119
      %s137 = sphi 0, %s137
      %s139 = sphi 0, %s137
      %s140 = sphi 0, %s139
      %s154 = sphi 0, %s140
      %s160 = sphi 0, %s162
      %s163 = sphi 0, %s160
      %s164 = sphi 0, %s163
      %s180 = sphi 0, %s164
    $region4: #{tpu_custom_call.1} parent=1 // loop_header_branch
      %22 = sbr.rel (%p20) target = $region8
    $region5: #{tpu_custom_call.1} parent=1 // loop_body
      %s24 = ssub.s32 %s19, 1
      %s25 = ssub.s32 %s19, 2
      %s26 = sadd.s32 %s19, 1
      %s27 = ssub.s32 %s19, %s26
      %p28 = scmp.eq.s32.totalorder %s27, 0
      %s30 = sadd.s32 %s29, 1
      %s31 = scalar_select %p28, %s29, %s30
      %p34 = pneg %p28
      %p35 = scmp.eq.s32.totalorder %s19, 1
      %p36 = por %p34, %p35
      %p37 = scmp.ne.s32.totalorder %s29, %s32
      %p38 = scmp.eq.s32.totalorder %s19, 0
      %p39 = por %p37, %p38
      %p40 = scmp.ne.s32.totalorder %s29, %s32
      %p41 = scmp.eq.s32.totalorder %s24, 1
      %p42 = por %p40, %p41
      %p43 = scmp.ne.s32.totalorder %s32, %s33
      %p44 = scmp.eq.s32.totalorder %s24, 0
      %p45 = por %p43, %p44
      %p46 = scmp.ne.s32.totalorder %s32, %s33
      %p47 = scmp.eq.s32.totalorder %s25, 1
      %p48 = por %p46, %p47
      %p50 = scmp.ne.s32.totalorder %s33, %s49
      %p51 = scmp.eq.s32.totalorder %s25, 0
      %p52 = por %p50, %p51
      %s54 = sadd.s32 %s53, 1
      %p57 = scmp.eq.s32.totalorder %s19, 1
      %p58 = scmp.ne.s32.totalorder %s53, %s55
      %p59 = scmp.eq.s32.totalorder %s19, 0
      %p60 = por %p58, %p59
      %p61 = scmp.ne.s32.totalorder %s53, %s55
      %p62 = scmp.eq.s32.totalorder %s24, 1
      %p63 = por %p61, %p62
      %p64 = scmp.ne.s32.totalorder %s55, %s56
      %p65 = scmp.eq.s32.totalorder %s24, 0
      %p66 = por %p64, %p65
      %p67 = scmp.ne.s32.totalorder %s55, %s56
      %p68 = scmp.eq.s32.totalorder %s25, 1
      %p69 = por %p67, %p68
      %p71 = scmp.ne.s32.totalorder %s56, %s70
      %p72 = scmp.eq.s32.totalorder %s25, 0
      %p73 = por %p71, %p72
      %s75 = sadd.s32 %s74, 1
      %p78 = scmp.eq.s32.totalorder %s19, 1
      %p79 = scmp.ne.s32.totalorder %s74, %s76
      %p80 = scmp.eq.s32.totalorder %s19, 0
      %p81 = por %p79, %p80
      %p82 = scmp.ne.s32.totalorder %s74, %s76
      %p83 = scmp.eq.s32.totalorder %s24, 1
      %p84 = por %p82, %p83
      %p85 = scmp.ne.s32.totalorder %s76, %s77
      %p86 = scmp.eq.s32.totalorder %s24, 0
      %p87 = por %p85, %p86
      %p88 = scmp.ne.s32.totalorder %s76, %s77
      %p89 = scmp.eq.s32.totalorder %s25, 1
      %p90 = por %p88, %p89
      %p92 = scmp.ne.s32.totalorder %s77, %s91
      %p93 = scmp.eq.s32.totalorder %s25, 0
      %p94 = por %p92, %p93
      %s96 = sadd.s32 %s95, 1
      %p99 = scmp.eq.s32.totalorder %s19, 1
      %p100 = scmp.ne.s32.totalorder %s95, %s97
      %p101 = scmp.eq.s32.totalorder %s19, 0
      %p102 = por %p100, %p101
      %p103 = scmp.ne.s32.totalorder %s95, %s97
      %p104 = scmp.eq.s32.totalorder %s24, 1
      %p105 = por %p103, %p104
      %p106 = scmp.ne.s32.totalorder %s97, %s98
      %p107 = scmp.eq.s32.totalorder %s24, 0
      %p108 = por %p106, %p107
      %p109 = scmp.ne.s32.totalorder %s97, %s98
      %p110 = scmp.eq.s32.totalorder %s25, 1
      %p111 = por %p109, %p110
      %p113 = scmp.ne.s32.totalorder %s98, %s112
      %p114 = scmp.eq.s32.totalorder %s25, 0
      %p115 = por %p113, %p114
      %s117 = sadd.s32 %s116, 1
      %p120 = scmp.eq.s32.totalorder %s19, 1
      %p121 = scmp.ne.s32.totalorder %s116, %s118
      %p122 = scmp.eq.s32.totalorder %s19, 0
      %p123 = por %p121, %p122
      %p124 = scmp.ne.s32.totalorder %s116, %s118
      %p125 = scmp.eq.s32.totalorder %s24, 1
      %p126 = por %p124, %p125
      %p127 = scmp.ne.s32.totalorder %s118, %s119
      %p128 = scmp.eq.s32.totalorder %s24, 0
      %p129 = por %p127, %p128
      %p130 = scmp.ne.s32.totalorder %s118, %s119
      %p131 = scmp.eq.s32.totalorder %s25, 1
      %p132 = por %p130, %p131
      %p134 = scmp.ne.s32.totalorder %s119, %s133
      %p135 = scmp.eq.s32.totalorder %s25, 0
      %p136 = por %p134, %p135
      %s138 = sadd.s32 %s137, 1
      %p141 = scmp.eq.s32.totalorder %s19, 1
      %p142 = scmp.ne.s32.totalorder %s137, %s139
      %p143 = scmp.eq.s32.totalorder %s19, 0
      %p144 = por %p142, %p143
      %p145 = scmp.ne.s32.totalorder %s137, %s139
      %p146 = scmp.eq.s32.totalorder %s24, 1
      %p147 = por %p145, %p146
      %p148 = scmp.ne.s32.totalorder %s139, %s140
      %p149 = scmp.eq.s32.totalorder %s24, 0
      %p150 = por %p148, %p149
      %p151 = scmp.ne.s32.totalorder %s139, %s140
      %p152 = scmp.eq.s32.totalorder %s25, 1
      %p153 = por %p151, %p152
      %p155 = scmp.ne.s32.totalorder %s140, %s154
      %p156 = scmp.eq.s32.totalorder %s25, 0
      %p157 = por %p155, %p156
      %s158 = ssub.s32 %s19, %s26
      %p159 = scmp.eq.s32.totalorder %s158, 0
      %s161 = sadd.s32 %s160, 1
      %s162 = scalar_select %p159, %s160, %s161
      %p165 = pneg %p159
      %p166 = scmp.eq.s32.totalorder %s19, 1
      %p167 = por %p165, %p166
      %p168 = scmp.ne.s32.totalorder %s160, %s163
      %p169 = scmp.eq.s32.totalorder %s19, 0
      %p170 = por %p168, %p169
      %p171 = scmp.ne.s32.totalorder %s160, %s163
      %p172 = scmp.eq.s32.totalorder %s24, 1
      %p173 = por %p171, %p172
      %p174 = scmp.ne.s32.totalorder %s163, %s164
      %p175 = scmp.eq.s32.totalorder %s24, 0
      %p176 = por %p174, %p175
      %p177 = scmp.ne.s32.totalorder %s163, %s164
      %p178 = scmp.eq.s32.totalorder %s25, 1
      %p179 = por %p177, %p178
      %p181 = scmp.ne.s32.totalorder %s164, %s180
      %p182 = scmp.eq.s32.totalorder %s25, 0
      %p183 = por %p181, %p182
      %p184 = scmp.le.s32.totalorder 1, %s19
      %p185 = scmp.lt.s32.totalorder %s19, 3
      %p186 = pnand %p184, %p185
      %p187 = pneg %p186
      // Predicated region
      $region9: #{tpu_custom_call.1} parent=5 // pred_check
        _
      $region10: #{tpu_custom_call.1} parent=5 // pred_check_branch
        %189 = sbr.rel (%p186) target = $region12
      $region11: #{tpu_custom_call.1} parent=5 // pred_region
        %s190 = ssub.s32 %s19, 1
        // Predicated region
        $region13: #{tpu_custom_call.1} parent=11 // pred_check
          %p191 = pneg %p66
        $region14: #{tpu_custom_call.1} parent=11 // pred_check_branch
          %193 = sbr.rel (%p191) target = $region16
        $region15: #{tpu_custom_call.1} parent=11 // pred_region
          %s195 = ssub.s32 2048, 2048
          %196 = vsyncadd [#allocation6], %s195
          %s197 = sshll.u32 [#allocation5], 4
          %s198 = int_to_ptr.vmem [resolvable:$true] %s197
          %203 = dma.hbm_to_vmem [thread:$0]  %s1, 2048, %s198, [#allocation6], 256, 256, 16
        $region16: #{tpu_custom_call.1} parent=11 // pred_fallthru
          _
        // Predicated region
        $region17: #{tpu_custom_call.1} parent=11 // pred_check
          %p204 = pneg %p87
        $region18: #{tpu_custom_call.1} parent=11 // pred_check_branch
          %206 = sbr.rel (%p204) target = $region20
        $region19: #{tpu_custom_call.1} parent=11 // pred_region
          _
        $region20: #{tpu_custom_call.1} parent=11 // pred_fallthru
          _
        // Predicated region
        $region21: #{tpu_custom_call.1} parent=11 // pred_check
          %p207 = pneg %p108
        $region22: #{tpu_custom_call.1} parent=11 // pred_check_branch
          %209 = sbr.rel (%p207) target = $region24
        $region23: #{tpu_custom_call.1} parent=11 // pred_region
          _
        $region24: #{tpu_custom_call.1} parent=11 // pred_fallthru
          _
        // Predicated region
        $region25: #{tpu_custom_call.1} parent=11 // pred_check
          %p210 = pneg %p129
        $region26: #{tpu_custom_call.1} parent=11 // pred_check_branch
          %212 = sbr.rel (%p210) target = $region28
        $region27: #{tpu_custom_call.1} parent=11 // pred_region
          _
        $region28: #{tpu_custom_call.1} parent=11 // pred_fallthru
          _
        // Predicated region
        $region29: #{tpu_custom_call.1} parent=11 // pred_check
          %p213 = pneg %p150
        $region30: #{tpu_custom_call.1} parent=11 // pred_check_branch
          %215 = sbr.rel (%p213) target = $region32
        $region31: #{tpu_custom_call.1} parent=11 // pred_region
          _
        $region32: #{tpu_custom_call.1} parent=11 // pred_fallthru
          _
      $region12: #{tpu_custom_call.1} parent=5 // pred_fallthru
        _
      %p216 = scmp.lt.s32.totalorder %s19, 2
      // Predicated region
      $region33: #{tpu_custom_call.1} parent=5 // pred_check
        %p217 = pneg %p216
      $region34: #{tpu_custom_call.1} parent=5 // pred_check_branch
        %219 = sbr.rel (%p217) target = $region36
      $region35: #{tpu_custom_call.1} parent=5 // pred_region
        // Predicated region
        $region37: #{tpu_custom_call.1} parent=35 // pred_check
          %p220 = pneg %p39
        $region38: #{tpu_custom_call.1} parent=35 // pred_check_branch
          %222 = sbr.rel (%p220) target = $region40
        $region39: #{tpu_custom_call.1} parent=35 // pred_region
          %s223 = sand.u32 %s29, 1
          %s224 = scalar_lea.sflag [#allocation3], %s223
          %s225 = sand.u32 %s29, 1
          %s226 = smul.addr %s225, 16
          %s227 = scalar_lea.vmem [#allocation2], %s226
          %s229 = ssub.s32 256, 256
          %230 = vsyncadd %s224, %s229
          %s231 = smul.addr %s19, 2
          %s232 = smul.addr %s231, 128
          %s233 = scalar_lea.hbm %s0, %s232
          %s234 = sshll.u32 %s227, 4
          %s235 = int_to_ptr.vmem [resolvable:$true] %s234
          %240 = dma.hbm_to_vmem [thread:$0]  %s233, 256, %s235, %s224, 128, 128, 8
        $region40: #{tpu_custom_call.1} parent=35 // pred_fallthru
          _
      $region36: #{tpu_custom_call.1} parent=5 // pred_fallthru
        _
      %p241 = scmp.le.s32.totalorder 1, %s19
      %p242 = scmp.lt.s32.totalorder %s19, 3
      %p243 = pnand %p241, %p242
      %p244 = pneg %p243
      // Predicated region
      $region41: #{tpu_custom_call.1} parent=5 // pred_check
        _
      $region42: #{tpu_custom_call.1} parent=5 // pred_check_branch
        %246 = sbr.rel (%p243) target = $region44
      $region43: #{tpu_custom_call.1} parent=5 // pred_region
        %s247 = ssub.s32 %s19, 1
        %s248 = sand.u32 %s32, 1
        %s249 = scalar_lea.sflag [#allocation3], %s248
        %s250 = sand.u32 %s32, 1
        %s251 = smul.addr %s250, 16
        %s252 = scalar_lea.vmem [#allocation2], %s251
        // Predicated region
        $region45: #{tpu_custom_call.1} parent=43 // pred_check
          %p253 = pneg %p45
        $region46: #{tpu_custom_call.1} parent=43 // pred_check_branch
          %255 = sbr.rel (%p253) target = $region48
        $region47: #{tpu_custom_call.1} parent=43 // pred_region
          %256 = dma.done %s249, 256
        $region48: #{tpu_custom_call.1} parent=43 // pred_fallthru
          _
        // Predicated region
        $region49: #{tpu_custom_call.1} parent=43 // pred_check
          %p257 = pneg %p66
        $region50: #{tpu_custom_call.1} parent=43 // pred_check_branch
          %259 = sbr.rel (%p257) target = $region52
        $region51: #{tpu_custom_call.1} parent=43 // pred_region
          %260 = dma.done [#allocation6], 2048
        $region52: #{tpu_custom_call.1} parent=43 // pred_fallthru
          _
        %s261 = sand.u32 %s32, 1
        %s262 = scalar_lea.sflag [#allocation3], %s261
        %s263 = sand.u32 %s32, 1
        %s264 = smul.addr %s263, 16
        %s265 = scalar_lea.vmem [#allocation2], %s264
        %p266 = pneg %p45
        %p267 = pneg %p42
        %p268 = pneg %p66
        %p269 = pneg %p63
        %p270 = pneg %p87
        %p271 = pneg %p84
        %p272 = pneg %p108
        %p273 = pneg %p105
        %p274 = pneg %p129
        %p275 = pneg %p126
        %p276 = pneg %p150
        %p277 = pneg %p147
        %p278 = pneg %p176
        %p279 = pneg %p173
        %s280 = sand.u32 %s163, 1
        %s281 = scalar_lea.sflag [#allocation4], %s280
        %s282 = sand.u32 %s163, 1
        %s283 = smul.addr %s282, 16
        %s284 = scalar_lea.vmem [#allocation7], %s283
        %v285 = vld [vmem:[%s252] sm:$0xff]
        %v286 = vld [vmem:[%s252 + $0x8] sm:$0xff]
        %v287 = vld [vmem:[#allocation5] sm:$0xff]
        %v288 = vld [vmem:[#allocation5 + $0x8] sm:$0xff]
        %v289 = vld [vmem:[#allocation5 + $0x10] sm:$0xff]
        %v290 = vld [vmem:[#allocation5 + $0x18] sm:$0xff]
        %v291 = vld [vmem:[#allocation5 + $0x20] sm:$0xff]
        %v292 = vld [vmem:[#allocation5 + $0x28] sm:$0xff]
        %v293 = vld [vmem:[#allocation5 + $0x30] sm:$0xff]
        %v294 = vld [vmem:[#allocation5 + $0x38] sm:$0xff]
        %v295 = vld [vmem:[#allocation5 + $0x40] sm:$0xff]
        %v296 = vld [vmem:[#allocation5 + $0x48] sm:$0xff]
        %v297 = vld [vmem:[#allocation5 + $0x50] sm:$0xff]
        %v298 = vld [vmem:[#allocation5 + $0x58] sm:$0xff]
        %v299 = vld [vmem:[#allocation5 + $0x60] sm:$0xff]
        %v300 = vld [vmem:[#allocation5 + $0x68] sm:$0xff]
        %v301 = vld [vmem:[#allocation5 + $0x70] sm:$0xff]
        %v302 = vld [vmem:[#allocation5 + $0x78] sm:$0xff]
        %vm303 = vcmask 523264
        %v305 = vsel %vm303, %v285, 0
        %v308 = vsel %vm303, %v286, 0
        %310 = vmatprep.subr.mxu0 %v288
        %311 = vmatpush1.msra.mxu0 %v287
        %312 = vmatprep.subr.mxu0 %v290
        %313 = vmatpush1.msra.mxu0 %v289
        %314 = vmatprep.subr.mxu0 %v292
        %315 = vmatpush1.msra.mxu0 %v291
        %316 = vmatprep.subr.mxu0 %v294
        %317 = vmatpush1.msra.mxu0 %v293
        %318 = vmatprep.subr.mxu0 %v296
        %319 = vmatpush1.msra.mxu0 %v295
        %320 = vmatprep.subr.mxu0 %v298
        %321 = vmatpush1.msra.mxu0 %v297
        %322 = vmatprep.subr.mxu0 %v300
        %323 = vmatpush1.msra.mxu0 %v299
        %324 = vmatprep.subr.mxu0 %v302
        %325 = vmatpush1.msra.mxu0 %v301
        %326 = vmatprep.subr.mxu0 0.0
        %327 = vmatpush1.msra.mxu0 0.0
        %328 = vmatprep.subr.mxu0 0.0
        %329 = vmatpush1.msra.mxu0 0.0
        %330 = vmatprep.subr.mxu0 0.0
        %331 = vmatpush1.msra.mxu0 0.0
        %332 = vmatprep.subr.mxu0 0.0
        %333 = vmatpush1.msra.mxu0 0.0
        %334 = vmatprep.subr.mxu0 0.0
        %335 = vmatpush1.msra.mxu0 0.0
        %336 = vmatprep.subr.mxu0 0.0
        %337 = vmatpush1.msra.mxu0 0.0
        %338 = vmatprep.subr.mxu0 0.0
        %339 = vmatpush1.msra.mxu0 0.0
        %340 = vmatprep.subr.mxu0 0.0
        %341 = vmatpush1.msra.mxu0 0.0
        %342 = vmatprep.subr.mxu0 0.0
        %343 = vmatpush1.msra.mxu0 0.0
        %344 = vmatprep.subr.mxu0 0.0
        %345 = vmatpush1.msra.mxu0 0.0
        %346 = vmatprep.subr.mxu0 0.0
        %347 = vmatpush1.msra.mxu0 0.0
        %348 = vmatprep.subr.mxu0 0.0
        %349 = vmatpush1.msra.mxu0 0.0
        %350 = vmatprep.subr.mxu0 0.0
        %351 = vmatpush1.msra.mxu0 0.0
        %352 = vmatprep.subr.mxu0 0.0
        %353 = vmatpush1.msra.mxu0 0.0
        %354 = vmatprep.subr.mxu0 0.0
        %355 = vmatpush1.msra.mxu0 0.0
        %356 = vmatprep.subr.mxu0 0.0
        %357 = vmatpush1.msra.mxu0 0.0
        %358 = vmatprep.subr.mxu0 0.0
        %359 = vmatpush1.msra.mxu0 0.0
        %360 = vmatprep.subr.mxu0 0.0
        %361 = vmatpush1.msra.mxu0 0.0
        %362 = vmatprep.subr.mxu0 0.0
        %363 = vmatpush1.msra.mxu0 0.0
        %364 = vmatprep.subr.mxu0 0.0
        %365 = vmatpush1.msra.mxu0 0.0
        %366 = vmatprep.subr.mxu0 0.0
        %367 = vmatpush1.msra.mxu0 0.0
        %368 = vmatprep.subr.mxu0 0.0
        %369 = vmatpush1.msra.mxu0 0.0
        %370 = vmatprep.subr.mxu0 0.0
        %371 = vmatpush1.msra.mxu0 0.0
        %372 = vmatprep.subr.mxu0 0.0
        %373 = vmatpush1.msra.mxu0 0.0
        %374 = vmatprep.mubr.f32.mxu0 0.0
        %375 = vmatmul.mubr.f32.gmra.mrb[0].mxu0 %v305
        %v376 = vpop.f32.mrb[0].mxu0
        %v377 = vadd.f32 0.0, %v376
        %v378 = vpop.f32.mrb[0].mxu0
        %v379 = vadd.f32 0.0, %v378
        %380 = vmatprep.mubr.f32.mxu0 0.0
        %381 = vmatmul.mubr.f32.gmra.mrb[0].mxu0 %v308
        %v382 = vpop.f32.mrb[0].mxu0
        %v383 = vadd.f32 0.0, %v382
        %v384 = vpop.f32.mrb[0].mxu0
        %v385 = vadd.f32 0.0, %v384
        %386 = vdwg.mxu0
        %v387 = vld [vmem:[%s2] sm:$0xff]
        %v388 = vld [vmem:[%s2 + $0x8] sm:$0xff]
        %v389 = vld [vmem:[%s2 + $0x10] sm:$0xff]
        %v390 = vld [vmem:[%s2 + $0x18] sm:$0xff]
        %v391 = vld [vmem:[%s2 + $0x20] sm:$0xff]
        %v392 = vld [vmem:[%s2 + $0x28] sm:$0xff]
        %v393 = vld [vmem:[%s3] sm:$0x1]
        %396 = vrot.lane.b32.xlu0 %v377, 64
        %v397 = vpop.permute.xlu0 %396
        %398 = vrot.lane.b32.xlu0 %v383, 64
        %v399 = vpop.permute.xlu0 %398
        %vm400 = vcmask 130048
        %v401 = vsel %vm400, %v397, 0
        %v403 = vsel %vm400, %v399, 0
        %405 = vmatprep.subr.mxu0 0.0
        %406 = vmatpush1.msra.mxu0 %v389
        %407 = vmatprep.subr.mxu0 0.0
        %408 = vmatpush1.msra.mxu0 %v390
        %409 = vmatprep.subr.mxu0 0.0
        %410 = vmatpush1.msra.mxu0 0.0
        %411 = vmatprep.subr.mxu0 0.0
        %412 = vmatpush1.msra.mxu0 0.0
        %413 = vmatprep.subr.mxu0 0.0
        %414 = vmatpush1.msra.mxu0 0.0
        %415 = vmatprep.subr.mxu0 0.0
        %416 = vmatpush1.msra.mxu0 0.0
        %417 = vmatprep.subr.mxu0 0.0
        %418 = vmatpush1.msra.mxu0 0.0
        %419 = vmatprep.subr.mxu0 0.0
        %420 = vmatpush1.msra.mxu0 0.0
        %421 = vmatprep.subr.mxu0 0.0
        %422 = vmatpush1.msra.mxu0 0.0
        %423 = vmatprep.subr.mxu0 0.0
        %424 = vmatpush1.msra.mxu0 0.0
        %425 = vmatprep.subr.mxu0 0.0
        %426 = vmatpush1.msra.mxu0 0.0
        %427 = vmatprep.subr.mxu0 0.0
        %428 = vmatpush1.msra.mxu0 0.0
        %429 = vmatprep.subr.mxu0 0.0
        %430 = vmatpush1.msra.mxu0 0.0
        %431 = vmatprep.subr.mxu0 0.0
        %432 = vmatpush1.msra.mxu0 0.0
        %433 = vmatprep.subr.mxu0 0.0
        %434 = vmatpush1.msra.mxu0 0.0
        %435 = vmatprep.subr.mxu0 0.0
        %436 = vmatpush1.msra.mxu0 0.0
        %437 = vmatprep.subr.mxu0 0.0
        %438 = vmatpush1.msra.mxu0 0.0
        %439 = vmatprep.subr.mxu0 0.0
        %440 = vmatpush1.msra.mxu0 0.0
        %441 = vmatprep.subr.mxu0 0.0
        %442 = vmatpush1.msra.mxu0 0.0
        %443 = vmatprep.subr.mxu0 0.0
        %444 = vmatpush1.msra.mxu0 0.0
        %445 = vmatprep.subr.mxu0 0.0
        %446 = vmatpush1.msra.mxu0 0.0
        %447 = vmatprep.subr.mxu0 0.0
        %448 = vmatpush1.msra.mxu0 0.0
        %449 = vmatprep.subr.mxu0 0.0
        %450 = vmatpush1.msra.mxu0 0.0
        %451 = vmatprep.subr.mxu0 0.0
        %452 = vmatpush1.msra.mxu0 0.0
        %453 = vmatprep.subr.mxu0 0.0
        %454 = vmatpush1.msra.mxu0 0.0
        %455 = vmatprep.subr.mxu0 0.0
        %456 = vmatpush1.msra.mxu0 0.0
        %457 = vmatprep.subr.mxu0 0.0
        %458 = vmatpush1.msra.mxu0 0.0
        %459 = vmatprep.subr.mxu0 0.0
        %460 = vmatpush1.msra.mxu0 0.0
        %461 = vmatprep.subr.mxu0 0.0
        %462 = vmatpush1.msra.mxu0 0.0
        %463 = vmatprep.subr.mxu0 0.0
        %464 = vmatpush1.msra.mxu0 0.0
        %465 = vmatprep.subr.mxu0 0.0
        %466 = vmatpush1.msra.mxu0 0.0
        %467 = vmatprep.subr.mxu0 0.0
        %468 = vmatpush1.msra.mxu0 0.0
        %469 = vmatprep.mubr.f32.mxu0 0.0
        %470 = vmatmul.mubr.f32.gmra.mrb[0].mxu0 %v401
        %v471 = vpop.f32.mrb[0].mxu0
        %v472 = vadd.f32 0.0, %v471
        %v473 = vpop.f32.mrb[0].mxu0
        %474 = vmatprep.mubr.f32.mxu0 0.0
        %475 = vmatmul.mubr.f32.gmra.mrb[0].mxu0 %v403
        %v476 = vpop.f32.mrb[0].mxu0
        %v477 = vadd.f32 0.0, %v476
        %v478 = vpop.f32.mrb[0].mxu0
        %479 = vdwg.mxu0
        %v480 = vsel %vm400, %v377, 0
        %v482 = vsel %vm400, %v383, 0
        %484 = vmatprep.subr.mxu0 0.0
        %485 = vmatpush1.msra.mxu0 %v387
        %486 = vmatprep.subr.mxu0 0.0
        %487 = vmatpush1.msra.mxu0 %v388
        %488 = vmatprep.subr.mxu0 0.0
        %489 = vmatpush1.msra.mxu0 0.0
        %490 = vmatprep.subr.mxu0 0.0
        %491 = vmatpush1.msra.mxu0 0.0
        %492 = vmatprep.subr.mxu0 0.0
        %493 = vmatpush1.msra.mxu0 0.0
        %494 = vmatprep.subr.mxu0 0.0
        %495 = vmatpush1.msra.mxu0 0.0
        %496 = vmatprep.subr.mxu0 0.0
        %497 = vmatpush1.msra.mxu0 0.0
        %498 = vmatprep.subr.mxu0 0.0
        %499 = vmatpush1.msra.mxu0 0.0
        %500 = vmatprep.subr.mxu0 0.0
        %501 = vmatpush1.msra.mxu0 0.0
        %502 = vmatprep.subr.mxu0 0.0
        %503 = vmatpush1.msra.mxu0 0.0
        %504 = vmatprep.subr.mxu0 0.0
        %505 = vmatpush1.msra.mxu0 0.0
        %506 = vmatprep.subr.mxu0 0.0
        %507 = vmatpush1.msra.mxu0 0.0
        %508 = vmatprep.subr.mxu0 0.0
        %509 = vmatpush1.msra.mxu0 0.0
        %510 = vmatprep.subr.mxu0 0.0
        %511 = vmatpush1.msra.mxu0 0.0
        %512 = vmatprep.subr.mxu0 0.0
        %513 = vmatpush1.msra.mxu0 0.0
        %514 = vmatprep.subr.mxu0 0.0
        %515 = vmatpush1.msra.mxu0 0.0
        %516 = vmatprep.subr.mxu0 0.0
        %517 = vmatpush1.msra.mxu0 0.0
        %518 = vmatprep.subr.mxu0 0.0
        %519 = vmatpush1.msra.mxu0 0.0
        %520 = vmatprep.subr.mxu0 0.0
        %521 = vmatpush1.msra.mxu0 0.0
        %522 = vmatprep.subr.mxu0 0.0
        %523 = vmatpush1.msra.mxu0 0.0
        %524 = vmatprep.subr.mxu0 0.0
        %525 = vmatpush1.msra.mxu0 0.0
        %526 = vmatprep.subr.mxu0 0.0
        %527 = vmatpush1.msra.mxu0 0.0
        %528 = vmatprep.subr.mxu0 0.0
        %529 = vmatpush1.msra.mxu0 0.0
        %530 = vmatprep.subr.mxu0 0.0
        %531 = vmatpush1.msra.mxu0 0.0
        %532 = vmatprep.subr.mxu0 0.0
        %533 = vmatpush1.msra.mxu0 0.0
        %534 = vmatprep.subr.mxu0 0.0
        %535 = vmatpush1.msra.mxu0 0.0
        %536 = vmatprep.subr.mxu0 0.0
        %537 = vmatpush1.msra.mxu0 0.0
        %538 = vmatprep.subr.mxu0 0.0
        %539 = vmatpush1.msra.mxu0 0.0
        %540 = vmatprep.subr.mxu0 0.0
        %541 = vmatpush1.msra.mxu0 0.0
        %542 = vmatprep.subr.mxu0 0.0
        %543 = vmatpush1.msra.mxu0 0.0
        %544 = vmatprep.subr.mxu0 0.0
        %545 = vmatpush1.msra.mxu0 0.0
        %546 = vmatprep.subr.mxu0 0.0
        %547 = vmatpush1.msra.mxu0 0.0
        %548 = vmatprep.mubr.f32.mxu0 0.0
        %549 = vmatmul.mubr.f32.gmra.mrb[0].mxu0 %v480
        %v550 = vpop.f32.mrb[0].mxu0
        %v551 = vadd.f32 %v472, %v550
        %v552 = vpop.f32.mrb[0].mxu0
        %553 = vmatprep.mubr.f32.mxu0 0.0
        %554 = vmatmul.mubr.f32.gmra.mrb[0].mxu0 %v482
        %v555 = vpop.f32.mrb[0].mxu0
        %v556 = vadd.f32 %v477, %v555
        %v557 = vpop.f32.mrb[0].mxu0
        %558 = vdwg.mxu0
        %v560 = vsel %vm400, %v379, 0
        %v563 = vsel %vm400, %v385, 0
        %565 = vmatprep.subr.mxu0 0.0
        %566 = vmatpush1.msra.mxu0 %v391
        %567 = vmatprep.subr.mxu0 0.0
        %568 = vmatpush1.msra.mxu0 %v392
        %569 = vmatprep.subr.mxu0 0.0
        %570 = vmatpush1.msra.mxu0 0.0
        %571 = vmatprep.subr.mxu0 0.0
        %572 = vmatpush1.msra.mxu0 0.0
        %573 = vmatprep.subr.mxu0 0.0
        %574 = vmatpush1.msra.mxu0 0.0
        %575 = vmatprep.subr.mxu0 0.0
        %576 = vmatpush1.msra.mxu0 0.0
        %577 = vmatprep.subr.mxu0 0.0
        %578 = vmatpush1.msra.mxu0 0.0
        %579 = vmatprep.subr.mxu0 0.0
        %580 = vmatpush1.msra.mxu0 0.0
        %581 = vmatprep.subr.mxu0 0.0
        %582 = vmatpush1.msra.mxu0 0.0
        %583 = vmatprep.subr.mxu0 0.0
        %584 = vmatpush1.msra.mxu0 0.0
        %585 = vmatprep.subr.mxu0 0.0
        %586 = vmatpush1.msra.mxu0 0.0
        %587 = vmatprep.subr.mxu0 0.0
        %588 = vmatpush1.msra.mxu0 0.0
        %589 = vmatprep.subr.mxu0 0.0
        %590 = vmatpush1.msra.mxu0 0.0
        %591 = vmatprep.subr.mxu0 0.0
        %592 = vmatpush1.msra.mxu0 0.0
        %593 = vmatprep.subr.mxu0 0.0
        %594 = vmatpush1.msra.mxu0 0.0
        %595 = vmatprep.subr.mxu0 0.0
        %596 = vmatpush1.msra.mxu0 0.0
        %597 = vmatprep.subr.mxu0 0.0
        %598 = vmatpush1.msra.mxu0 0.0
        %599 = vmatprep.subr.mxu0 0.0
        %600 = vmatpush1.msra.mxu0 0.0
        %601 = vmatprep.subr.mxu0 0.0
        %602 = vmatpush1.msra.mxu0 0.0
        %603 = vmatprep.subr.mxu0 0.0
        %604 = vmatpush1.msra.mxu0 0.0
        %605 = vmatprep.subr.mxu0 0.0
        %606 = vmatpush1.msra.mxu0 0.0
        %607 = vmatprep.subr.mxu0 0.0
        %608 = vmatpush1.msra.mxu0 0.0
        %609 = vmatprep.subr.mxu0 0.0
        %610 = vmatpush1.msra.mxu0 0.0
        %611 = vmatprep.subr.mxu0 0.0
        %612 = vmatpush1.msra.mxu0 0.0
        %613 = vmatprep.subr.mxu0 0.0
        %614 = vmatpush1.msra.mxu0 0.0
        %615 = vmatprep.subr.mxu0 0.0
        %616 = vmatpush1.msra.mxu0 0.0
        %617 = vmatprep.subr.mxu0 0.0
        %618 = vmatpush1.msra.mxu0 0.0
        %619 = vmatprep.subr.mxu0 0.0
        %620 = vmatpush1.msra.mxu0 0.0
        %621 = vmatprep.subr.mxu0 0.0
        %622 = vmatpush1.msra.mxu0 0.0
        %623 = vmatprep.subr.mxu0 0.0
        %624 = vmatpush1.msra.mxu0 0.0
        %625 = vmatprep.subr.mxu0 0.0
        %626 = vmatpush1.msra.mxu0 0.0
        %627 = vmatprep.subr.mxu0 0.0
        %628 = vmatpush1.msra.mxu0 0.0
        %629 = vmatprep.mubr.f32.mxu0 0.0
        %630 = vmatmul.mubr.f32.gmra.mrb[0].mxu0 %v560
        %v631 = vpop.f32.mrb[0].mxu0
        %v632 = vadd.f32 0.0, %v631
        %v633 = vpop.f32.mrb[0].mxu0
        %634 = vmatprep.mubr.f32.mxu0 0.0
        %635 = vmatmul.mubr.f32.gmra.mrb[0].mxu0 %v563
        %v636 = vpop.f32.mrb[0].mxu0
        %v637 = vadd.f32 0.0, %v636
        %v638 = vpop.f32.mrb[0].mxu0
        %639 = vdwg.mxu0
        %v640 = vadd.f32 %v551, %v632
        %v641 = vadd.f32 %v556, %v637
        %v643 = vlaneseq
        %v644 = vshrl.u32 %v643, 7
        %v645 = vsub.s32 0, %v644
        %v646 = vrot.slane %v393, %v645
        %v648 = vadd.f32 %v640, %v646
        %v649 = vadd.f32 %v641, %v646
        %v650 = vxor.u32 %v648, 2147483648
        %v651 = vxor.u32 %v649, 2147483648
        %v652 = vmul.f32 %v650, 1.442695
        %v653 = vpow.pop %v652
        %v654 = vmul.f32 %v651, 1.442695
        %v655 = vpow.pop %v654
        %v656 = vadd.f32 %v653, 1.0
        %v657 = vadd.f32 %v655, 1.0
        %v658 = vrcp.pop %v656
        %v659 = vmul.f32 1.0, %v658
        %v660 = vrcp.pop %v657
        %v661 = vmul.f32 1.0, %v660
        %v662 = vmul.f32 %v659, %v377
        %v663 = vmul.f32 %v661, %v383
        %v666 = vmul.f32 %v659, %v397
        %v667 = vmul.f32 %v661, %v399
        %v669 = vsel %vm400, %v662, 0
        %v672 = vsel %vm400, %v663, 0
        %v675 = vsel %vm400, %v666, 0
        %v678 = vsel %vm400, %v667, 0
        %680 = vmatprep.subr.mxu0 0.0
        %681 = vmatpush1.xpose.msra.mxu0 %v675
        %682 = vmatprep.subr.mxu0 0.0
        %683 = vmatpush1.xpose.msra.mxu0 %v678
        %684 = vmatprep.subr.mxu0 0.0
        %685 = vmatpush1.xpose.msra.mxu0 0.0
        %686 = vmatprep.subr.mxu0 0.0
        %687 = vmatpush1.xpose.msra.mxu0 0.0
        %688 = vmatprep.subr.mxu0 0.0
        %689 = vmatpush1.xpose.msra.mxu0 0.0
        %690 = vmatprep.subr.mxu0 0.0
        %691 = vmatpush1.xpose.msra.mxu0 0.0
        %692 = vmatprep.subr.mxu0 0.0
        %693 = vmatpush1.xpose.msra.mxu0 0.0
        %694 = vmatprep.subr.mxu0 0.0
        %695 = vmatpush1.xpose.msra.mxu0 0.0
        %696 = vmatprep.subr.mxu0 0.0
        %697 = vmatpush1.xpose.msra.mxu0 0.0
        %698 = vmatprep.subr.mxu0 0.0
        %699 = vmatpush1.xpose.msra.mxu0 0.0
        %700 = vmatprep.subr.mxu0 0.0
        %701 = vmatpush1.xpose.msra.mxu0 0.0
        %702 = vmatprep.subr.mxu0 0.0
        %703 = vmatpush1.xpose.msra.mxu0 0.0
        %704 = vmatprep.subr.mxu0 0.0
        %705 = vmatpush1.xpose.msra.mxu0 0.0
        %706 = vmatprep.subr.mxu0 0.0
        %707 = vmatpush1.xpose.msra.mxu0 0.0
        %708 = vmatprep.subr.mxu0 0.0
        %709 = vmatpush1.xpose.msra.mxu0 0.0
        %710 = vmatprep.subr.mxu0 0.0
        %711 = vmatpush1.xpose.msra.mxu0 0.0
        %712 = vmatprep.subr.mxu0 0.0
        %713 = vmatpush1.xpose.msra.mxu0 0.0
        %714 = vmatprep.subr.mxu0 0.0
        %715 = vmatpush1.xpose.msra.mxu0 0.0
        %716 = vmatprep.subr.mxu0 0.0
        %717 = vmatpush1.xpose.msra.mxu0 0.0
        %718 = vmatprep.subr.mxu0 0.0
        %719 = vmatpush1.xpose.msra.mxu0 0.0
        %720 = vmatprep.subr.mxu0 0.0
        %721 = vmatpush1.xpose.msra.mxu0 0.0
        %722 = vmatprep.subr.mxu0 0.0
        %723 = vmatpush1.xpose.msra.mxu0 0.0
        %724 = vmatprep.subr.mxu0 0.0
        %725 = vmatpush1.xpose.msra.mxu0 0.0
        %726 = vmatprep.subr.mxu0 0.0
        %727 = vmatpush1.xpose.msra.mxu0 0.0
        %728 = vmatprep.subr.mxu0 0.0
        %729 = vmatpush1.xpose.msra.mxu0 0.0
        %730 = vmatprep.subr.mxu0 0.0
        %731 = vmatpush1.xpose.msra.mxu0 0.0
        %732 = vmatprep.subr.mxu0 0.0
        %733 = vmatpush1.xpose.msra.mxu0 0.0
        %734 = vmatprep.subr.mxu0 0.0
        %735 = vmatpush1.xpose.msra.mxu0 0.0
        %736 = vmatprep.subr.mxu0 0.0
        %737 = vmatpush1.xpose.msra.mxu0 0.0
        %738 = vmatprep.subr.mxu0 0.0
        %739 = vmatpush1.xpose.msra.mxu0 0.0
        %740 = vmatprep.subr.mxu0 0.0
        %741 = vmatpush1.xpose.msra.mxu0 0.0
        %742 = vmatprep.subr.mxu0 0.0
        %743 = vmatpush1.xpose.msra.mxu0 0.0
        %744 = vmatprep.mubr.f32.mxu0 0.0
        %745 = vmatmul.mubr.f32.gmra.mrb[0].mxu0 %v669
        %v746 = vpop.f32.mrb[0].mxu0
        %v747 = vadd.f32 0.0, %v746
        %v748 = vpop.f32.mrb[0].mxu0
        %749 = vmatprep.mubr.f32.mxu0 0.0
        %750 = vmatmul.mubr.f32.gmra.mrb[0].mxu0 %v672
        %v751 = vpop.f32.mrb[0].mxu0
        %v752 = vadd.f32 0.0, %v751
        %v753 = vpop.f32.mrb[0].mxu0
        %754 = vdwg.mxu0
        %v755 = vmul.f32 %v747, 0.25
        %v756 = vmul.f32 %v752, 0.25
        %v757 = vsel %vm400, %v755, -inf
        %758 = vmax.xlane.f32.xlu0 %v757
        %v759 = vpop.xlane.xlu0 %758
        %v760 = vsel %vm400, %v756, -inf
        %761 = vmax.xlane.f32.xlu0 %v760
        %v762 = vpop.xlane.xlu0 %761
        %v763 = vsub.f32 %v755, %v759
        %v764 = vsub.f32 %v756, %v762
        %v765 = vmul.f32 %v763, 1.442695
        %v766 = vpow.pop %v765
        %v767 = vmul.f32 %v764, 1.442695
        %v768 = vpow.pop %v767
        %v769 = vsel %vm400, %v766, 0.0
        %770 = vadd.xlane.f32.xlu0 %v769
        %v771 = vpop.xlane.xlu0 %770
        %v772 = vsel %vm400, %v768, 0.0
        %773 = vadd.xlane.f32.xlu0 %v772
        %v774 = vpop.xlane.xlu0 %773
        %v775 = vrcp.pop %v771
        %v776 = vrcp.pop %v774
        %v777 = vmul.f32 %v766, %v775
        %v778 = vmul.f32 %v768, %v776
        %v780 = vsel %vm400, %v777, 0
        %v783 = vsel %vm400, %v778, 0
        %785 = vmatprep.subr.mxu0 0.0
        %786 = vmatpush1.msra.mxu0 %v379
        %787 = vmatprep.subr.mxu0 0.0
        %788 = vmatpush1.msra.mxu0 %v385
        %789 = vmatprep.subr.mxu0 0.0
        %790 = vmatpush1.msra.mxu0 0.0
        %791 = vmatprep.subr.mxu0 0.0
        %792 = vmatpush1.msra.mxu0 0.0
        %793 = vmatprep.subr.mxu0 0.0
        %794 = vmatpush1.msra.mxu0 0.0
        %795 = vmatprep.subr.mxu0 0.0
        %796 = vmatpush1.msra.mxu0 0.0
        %797 = vmatprep.subr.mxu0 0.0
        %798 = vmatpush1.msra.mxu0 0.0
        %799 = vmatprep.subr.mxu0 0.0
        %800 = vmatpush1.msra.mxu0 0.0
        %801 = vmatprep.subr.mxu0 0.0
        %802 = vmatpush1.msra.mxu0 0.0
        %803 = vmatprep.subr.mxu0 0.0
        %804 = vmatpush1.msra.mxu0 0.0
        %805 = vmatprep.subr.mxu0 0.0
        %806 = vmatpush1.msra.mxu0 0.0
        %807 = vmatprep.subr.mxu0 0.0
        %808 = vmatpush1.msra.mxu0 0.0
        %809 = vmatprep.subr.mxu0 0.0
        %810 = vmatpush1.msra.mxu0 0.0
        %811 = vmatprep.subr.mxu0 0.0
        %812 = vmatpush1.msra.mxu0 0.0
        %813 = vmatprep.subr.mxu0 0.0
        %814 = vmatpush1.msra.mxu0 0.0
        %815 = vmatprep.subr.mxu0 0.0
        %816 = vmatpush1.msra.mxu0 0.0
        %817 = vmatprep.subr.mxu0 0.0
        %818 = vmatpush1.msra.mxu0 0.0
        %819 = vmatprep.subr.mxu0 0.0
        %820 = vmatpush1.msra.mxu0 0.0
        %821 = vmatprep.subr.mxu0 0.0
        %822 = vmatpush1.msra.mxu0 0.0
        %823 = vmatprep.subr.mxu0 0.0
        %824 = vmatpush1.msra.mxu0 0.0
        %825 = vmatprep.subr.mxu0 0.0
        %826 = vmatpush1.msra.mxu0 0.0
        %827 = vmatprep.subr.mxu0 0.0
        %828 = vmatpush1.msra.mxu0 0.0
        %829 = vmatprep.subr.mxu0 0.0
        %830 = vmatpush1.msra.mxu0 0.0
        %831 = vmatprep.subr.mxu0 0.0
        %832 = vmatpush1.msra.mxu0 0.0
        %833 = vmatprep.subr.mxu0 0.0
        %834 = vmatpush1.msra.mxu0 0.0
        %835 = vmatprep.subr.mxu0 0.0
        %836 = vmatpush1.msra.mxu0 0.0
        %837 = vmatprep.subr.mxu0 0.0
        %838 = vmatpush1.msra.mxu0 0.0
        %839 = vmatprep.subr.mxu0 0.0
        %840 = vmatpush1.msra.mxu0 0.0
        %841 = vmatprep.subr.mxu0 0.0
        %842 = vmatpush1.msra.mxu0 0.0
        %843 = vmatprep.subr.mxu0 0.0
        %844 = vmatpush1.msra.mxu0 0.0
        %845 = vmatprep.subr.mxu0 0.0
        %846 = vmatpush1.msra.mxu0 0.0
        %847 = vmatprep.subr.mxu0 0.0
        %848 = vmatpush1.msra.mxu0 0.0
        %849 = vmatprep.mubr.f32.mxu0 0.0
        %850 = vmatmul.mubr.f32.gmra.mrb[0].mxu0 %v780
        %v851 = vpop.f32.mrb[0].mxu0
        %v852 = vadd.f32 0.0, %v851
        %v853 = vpop.f32.mrb[0].mxu0
        %854 = vmatprep.mubr.f32.mxu0 0.0
        %855 = vmatmul.mubr.f32.gmra.mrb[0].mxu0 %v783
        %v856 = vpop.f32.mrb[0].mxu0
        %v857 = vadd.f32 0.0, %v856
        %v858 = vpop.f32.mrb[0].mxu0
        %859 = vdwg.mxu0
        %860 = vrot.lane.b32.xlu0 %v377, 48
        %v861 = vpop.permute.xlu0 %860
        %862 = vrot.lane.b32.xlu0 %v383, 48
        %v863 = vpop.permute.xlu0 %862
        %v864 = vsel %vm400, %v861, 0
        %v866 = vsel %vm400, %v863, 0
        %868 = vmatprep.subr.mxu0 0.0
        %869 = vmatpush1.msra.mxu0 %v389
        %870 = vmatprep.subr.mxu0 0.0
        %871 = vmatpush1.msra.mxu0 %v390
        %872 = vmatprep.subr.mxu0 0.0
        %873 = vmatpush1.msra.mxu0 0.0
        %874 = vmatprep.subr.mxu0 0.0
        %875 = vmatpush1.msra.mxu0 0.0
        %876 = vmatprep.subr.mxu0 0.0
        %877 = vmatpush1.msra.mxu0 0.0
        %878 = vmatprep.subr.mxu0 0.0
        %879 = vmatpush1.msra.mxu0 0.0
        %880 = vmatprep.subr.mxu0 0.0
        %881 = vmatpush1.msra.mxu0 0.0
        %882 = vmatprep.subr.mxu0 0.0
        %883 = vmatpush1.msra.mxu0 0.0
        %884 = vmatprep.subr.mxu0 0.0
        %885 = vmatpush1.msra.mxu0 0.0
        %886 = vmatprep.subr.mxu0 0.0
        %887 = vmatpush1.msra.mxu0 0.0
        %888 = vmatprep.subr.mxu0 0.0
        %889 = vmatpush1.msra.mxu0 0.0
        %890 = vmatprep.subr.mxu0 0.0
        %891 = vmatpush1.msra.mxu0 0.0
        %892 = vmatprep.subr.mxu0 0.0
        %893 = vmatpush1.msra.mxu0 0.0
        %894 = vmatprep.subr.mxu0 0.0
        %895 = vmatpush1.msra.mxu0 0.0
        %896 = vmatprep.subr.mxu0 0.0
        %897 = vmatpush1.msra.mxu0 0.0
        %898 = vmatprep.subr.mxu0 0.0
        %899 = vmatpush1.msra.mxu0 0.0
        %900 = vmatprep.subr.mxu0 0.0
        %901 = vmatpush1.msra.mxu0 0.0
        %902 = vmatprep.subr.mxu0 0.0
        %903 = vmatpush1.msra.mxu0 0.0
        %904 = vmatprep.subr.mxu0 0.0
        %905 = vmatpush1.msra.mxu0 0.0
        %906 = vmatprep.subr.mxu0 0.0
        %907 = vmatpush1.msra.mxu0 0.0
        %908 = vmatprep.subr.mxu0 0.0
        %909 = vmatpush1.msra.mxu0 0.0
        %910 = vmatprep.subr.mxu0 0.0
        %911 = vmatpush1.msra.mxu0 0.0
        %912 = vmatprep.subr.mxu0 0.0
        %913 = vmatpush1.msra.mxu0 0.0
        %914 = vmatprep.subr.mxu0 0.0
        %915 = vmatpush1.msra.mxu0 0.0
        %916 = vmatprep.subr.mxu0 0.0
        %917 = vmatpush1.msra.mxu0 0.0
        %918 = vmatprep.subr.mxu0 0.0
        %919 = vmatpush1.msra.mxu0 0.0
        %920 = vmatprep.subr.mxu0 0.0
        %921 = vmatpush1.msra.mxu0 0.0
        %922 = vmatprep.subr.mxu0 0.0
        %923 = vmatpush1.msra.mxu0 0.0
        %924 = vmatprep.subr.mxu0 0.0
        %925 = vmatpush1.msra.mxu0 0.0
        %926 = vmatprep.subr.mxu0 0.0
        %927 = vmatpush1.msra.mxu0 0.0
        %928 = vmatprep.subr.mxu0 0.0
        %929 = vmatpush1.msra.mxu0 0.0
        %930 = vmatprep.subr.mxu0 0.0
        %931 = vmatpush1.msra.mxu0 0.0
        %932 = vmatprep.mubr.f32.mxu0 0.0
        %933 = vmatmul.mubr.f32.gmra.mrb[0].mxu0 %v864
        %v934 = vpop.f32.mrb[0].mxu0
        %v935 = vadd.f32 0.0, %v934
        %v936 = vpop.f32.mrb[0].mxu0
        %937 = vmatprep.mubr.f32.mxu0 0.0
        %938 = vmatmul.mubr.f32.gmra.mrb[0].mxu0 %v866
        %v939 = vpop.f32.mrb[0].mxu0
        %v940 = vadd.f32 0.0, %v939
        %v941 = vpop.f32.mrb[0].mxu0
        %942 = vdwg.mxu0
        %943 = vrot.lane.b32.xlu0 %v377, 112
        %v944 = vpop.permute.xlu0 %943
        %945 = vrot.lane.b32.xlu0 %v383, 112
        %v946 = vpop.permute.xlu0 %945
        %v947 = vsel %vm400, %v944, 0
        %v949 = vsel %vm400, %v946, 0
        %951 = vmatprep.subr.mxu0 0.0
        %952 = vmatpush1.msra.mxu0 %v387
        %953 = vmatprep.subr.mxu0 0.0
        %954 = vmatpush1.msra.mxu0 %v388
        %955 = vmatprep.subr.mxu0 0.0
        %956 = vmatpush1.msra.mxu0 0.0
        %957 = vmatprep.subr.mxu0 0.0
        %958 = vmatpush1.msra.mxu0 0.0
        %959 = vmatprep.subr.mxu0 0.0
        %960 = vmatpush1.msra.mxu0 0.0
        %961 = vmatprep.subr.mxu0 0.0
        %962 = vmatpush1.msra.mxu0 0.0
        %963 = vmatprep.subr.mxu0 0.0
        %964 = vmatpush1.msra.mxu0 0.0
        %965 = vmatprep.subr.mxu0 0.0
        %966 = vmatpush1.msra.mxu0 0.0
        %967 = vmatprep.subr.mxu0 0.0
        %968 = vmatpush1.msra.mxu0 0.0
        %969 = vmatprep.subr.mxu0 0.0
        %970 = vmatpush1.msra.mxu0 0.0
        %971 = vmatprep.subr.mxu0 0.0
        %972 = vmatpush1.msra.mxu0 0.0
        %973 = vmatprep.subr.mxu0 0.0
        %974 = vmatpush1.msra.mxu0 0.0
        %975 = vmatprep.subr.mxu0 0.0
        %976 = vmatpush1.msra.mxu0 0.0
        %977 = vmatprep.subr.mxu0 0.0
        %978 = vmatpush1.msra.mxu0 0.0
        %979 = vmatprep.subr.mxu0 0.0
        %980 = vmatpush1.msra.mxu0 0.0
        %981 = vmatprep.subr.mxu0 0.0
        %982 = vmatpush1.msra.mxu0 0.0
        %983 = vmatprep.subr.mxu0 0.0
        %984 = vmatpush1.msra.mxu0 0.0
        %985 = vmatprep.subr.mxu0 0.0
        %986 = vmatpush1.msra.mxu0 0.0
        %987 = vmatprep.subr.mxu0 0.0
        %988 = vmatpush1.msra.mxu0 0.0
        %989 = vmatprep.subr.mxu0 0.0
        %990 = vmatpush1.msra.mxu0 0.0
        %991 = vmatprep.subr.mxu0 0.0
        %992 = vmatpush1.msra.mxu0 0.0
        %993 = vmatprep.subr.mxu0 0.0
        %994 = vmatpush1.msra.mxu0 0.0
        %995 = vmatprep.subr.mxu0 0.0
        %996 = vmatpush1.msra.mxu0 0.0
        %997 = vmatprep.subr.mxu0 0.0
        %998 = vmatpush1.msra.mxu0 0.0
        %999 = vmatprep.subr.mxu0 0.0
        %1000 = vmatpush1.msra.mxu0 0.0
        %1001 = vmatprep.subr.mxu0 0.0
        %1002 = vmatpush1.msra.mxu0 0.0
        %1003 = vmatprep.subr.mxu0 0.0
        %1004 = vmatpush1.msra.mxu0 0.0
        %1005 = vmatprep.subr.mxu0 0.0
        %1006 = vmatpush1.msra.mxu0 0.0
        %1007 = vmatprep.subr.mxu0 0.0
        %1008 = vmatpush1.msra.mxu0 0.0
        %1009 = vmatprep.subr.mxu0 0.0
        %1010 = vmatpush1.msra.mxu0 0.0
        %1011 = vmatprep.subr.mxu0 0.0
        %1012 = vmatpush1.msra.mxu0 0.0
        %1013 = vmatprep.subr.mxu0 0.0
        %1014 = vmatpush1.msra.mxu0 0.0
        %1015 = vmatprep.mubr.f32.mxu0 0.0
        %1016 = vmatmul.mubr.f32.gmra.mrb[0].mxu0 %v947
        %v1017 = vpop.f32.mrb[0].mxu0
        %v1018 = vadd.f32 %v935, %v1017
        %v1019 = vpop.f32.mrb[0].mxu0
        %1020 = vmatprep.mubr.f32.mxu0 0.0
        %1021 = vmatmul.mubr.f32.gmra.mrb[0].mxu0 %v949
        %v1022 = vpop.f32.mrb[0].mxu0
        %v1023 = vadd.f32 %v940, %v1022
        %v1024 = vpop.f32.mrb[0].mxu0
        %1025 = vdwg.mxu0
        %1026 = vrot.lane.b32.xlu0 %v379, 112
        %v1027 = vpop.permute.xlu0 %1026
        %1028 = vrot.lane.b32.xlu0 %v385, 112
        %v1029 = vpop.permute.xlu0 %1028
        %v1030 = vsel %vm400, %v1027, 0
        %v1032 = vsel %vm400, %v1029, 0
        %1034 = vmatprep.subr.mxu0 0.0
        %1035 = vmatpush1.msra.mxu0 %v391
        %1036 = vmatprep.subr.mxu0 0.0
        %1037 = vmatpush1.msra.mxu0 %v392
        %1038 = vmatprep.subr.mxu0 0.0
        %1039 = vmatpush1.msra.mxu0 0.0
        %1040 = vmatprep.subr.mxu0 0.0
        %1041 = vmatpush1.msra.mxu0 0.0
        %1042 = vmatprep.subr.mxu0 0.0
        %1043 = vmatpush1.msra.mxu0 0.0
        %1044 = vmatprep.subr.mxu0 0.0
        %1045 = vmatpush1.msra.mxu0 0.0
        %1046 = vmatprep.subr.mxu0 0.0
        %1047 = vmatpush1.msra.mxu0 0.0
        %1048 = vmatprep.subr.mxu0 0.0
        %1049 = vmatpush1.msra.mxu0 0.0
        %1050 = vmatprep.subr.mxu0 0.0
        %1051 = vmatpush1.msra.mxu0 0.0
        %1052 = vmatprep.subr.mxu0 0.0
        %1053 = vmatpush1.msra.mxu0 0.0
        %1054 = vmatprep.subr.mxu0 0.0
        %1055 = vmatpush1.msra.mxu0 0.0
        %1056 = vmatprep.subr.mxu0 0.0
        %1057 = vmatpush1.msra.mxu0 0.0
        %1058 = vmatprep.subr.mxu0 0.0
        %1059 = vmatpush1.msra.mxu0 0.0
        %1060 = vmatprep.subr.mxu0 0.0
        %1061 = vmatpush1.msra.mxu0 0.0
        %1062 = vmatprep.subr.mxu0 0.0
        %1063 = vmatpush1.msra.mxu0 0.0
        %1064 = vmatprep.subr.mxu0 0.0
        %1065 = vmatpush1.msra.mxu0 0.0
        %1066 = vmatprep.subr.mxu0 0.0
        %1067 = vmatpush1.msra.mxu0 0.0
        %1068 = vmatprep.subr.mxu0 0.0
        %1069 = vmatpush1.msra.mxu0 0.0
        %1070 = vmatprep.subr.mxu0 0.0
        %1071 = vmatpush1.msra.mxu0 0.0
        %1072 = vmatprep.subr.mxu0 0.0
        %1073 = vmatpush1.msra.mxu0 0.0
        %1074 = vmatprep.subr.mxu0 0.0
        %1075 = vmatpush1.msra.mxu0 0.0
        %1076 = vmatprep.subr.mxu0 0.0
        %1077 = vmatpush1.msra.mxu0 0.0
        %1078 = vmatprep.subr.mxu0 0.0
        %1079 = vmatpush1.msra.mxu0 0.0
        %1080 = vmatprep.subr.mxu0 0.0
        %1081 = vmatpush1.msra.mxu0 0.0
        %1082 = vmatprep.subr.mxu0 0.0
        %1083 = vmatpush1.msra.mxu0 0.0
        %1084 = vmatprep.subr.mxu0 0.0
        %1085 = vmatpush1.msra.mxu0 0.0
        %1086 = vmatprep.subr.mxu0 0.0
        %1087 = vmatpush1.msra.mxu0 0.0
        %1088 = vmatprep.subr.mxu0 0.0
        %1089 = vmatpush1.msra.mxu0 0.0
        %1090 = vmatprep.subr.mxu0 0.0
        %1091 = vmatpush1.msra.mxu0 0.0
        %1092 = vmatprep.subr.mxu0 0.0
        %1093 = vmatpush1.msra.mxu0 0.0
        %1094 = vmatprep.subr.mxu0 0.0
        %1095 = vmatpush1.msra.mxu0 0.0
        %1096 = vmatprep.subr.mxu0 0.0
        %1097 = vmatpush1.msra.mxu0 0.0
        %1098 = vmatprep.mubr.f32.mxu0 0.0
        %1099 = vmatmul.mubr.f32.gmra.mrb[0].mxu0 %v1030
        %v1100 = vpop.f32.mrb[0].mxu0
        %v1101 = vadd.f32 0.0, %v1100
        %v1102 = vpop.f32.mrb[0].mxu0
        %1103 = vmatprep.mubr.f32.mxu0 0.0
        %1104 = vmatmul.mubr.f32.gmra.mrb[0].mxu0 %v1032
        %v1105 = vpop.f32.mrb[0].mxu0
        %v1106 = vadd.f32 0.0, %v1105
        %v1107 = vpop.f32.mrb[0].mxu0
        %1108 = vdwg.mxu0
        %v1109 = vadd.f32 %v1018, %v1101
        %v1110 = vadd.f32 %v1023, %v1106
        %v1111 = vadd.f32 %v1109, %v646
        %v1112 = vadd.f32 %v1110, %v646
        %v1113 = vxor.u32 %v1111, 2147483648
        %v1114 = vxor.u32 %v1112, 2147483648
        %v1115 = vmul.f32 %v1113, 1.442695
        %v1116 = vpow.pop %v1115
        %v1117 = vmul.f32 %v1114, 1.442695
        %v1118 = vpow.pop %v1117
        %v1119 = vadd.f32 %v1116, 1.0
        %v1120 = vadd.f32 %v1118, 1.0
        %v1121 = vrcp.pop %v1119
        %v1122 = vmul.f32 1.0, %v1121
        %v1123 = vrcp.pop %v1120
        %v1124 = vmul.f32 1.0, %v1123
        %v1127 = vmul.f32 %v1122, %v944
        %v1128 = vmul.f32 %v1124, %v946
        %v1131 = vmul.f32 %v1122, %v861
        %v1132 = vmul.f32 %v1124, %v863
        %v1134 = vsel %vm400, %v1127, 0
        %v1137 = vsel %vm400, %v1128, 0
        %v1140 = vsel %vm400, %v1131, 0
        %v1143 = vsel %vm400, %v1132, 0
        %1145 = vmatprep.subr.mxu0 0.0
        %1146 = vmatpush1.xpose.msra.mxu0 %v1140
        %1147 = vmatprep.subr.mxu0 0.0
        %1148 = vmatpush1.xpose.msra.mxu0 %v1143
        %1149 = vmatprep.subr.mxu0 0.0
        %1150 = vmatpush1.xpose.msra.mxu0 0.0
        %1151 = vmatprep.subr.mxu0 0.0
        %1152 = vmatpush1.xpose.msra.mxu0 0.0
        %1153 = vmatprep.subr.mxu0 0.0
        %1154 = vmatpush1.xpose.msra.mxu0 0.0
        %1155 = vmatprep.subr.mxu0 0.0
        %1156 = vmatpush1.xpose.msra.mxu0 0.0
        %1157 = vmatprep.subr.mxu0 0.0
        %1158 = vmatpush1.xpose.msra.mxu0 0.0
        %1159 = vmatprep.subr.mxu0 0.0
        %1160 = vmatpush1.xpose.msra.mxu0 0.0
        %1161 = vmatprep.subr.mxu0 0.0
        %1162 = vmatpush1.xpose.msra.mxu0 0.0
        %1163 = vmatprep.subr.mxu0 0.0
        %1164 = vmatpush1.xpose.msra.mxu0 0.0
        %1165 = vmatprep.subr.mxu0 0.0
        %1166 = vmatpush1.xpose.msra.mxu0 0.0
        %1167 = vmatprep.subr.mxu0 0.0
        %1168 = vmatpush1.xpose.msra.mxu0 0.0
        %1169 = vmatprep.subr.mxu0 0.0
        %1170 = vmatpush1.xpose.msra.mxu0 0.0
        %1171 = vmatprep.subr.mxu0 0.0
        %1172 = vmatpush1.xpose.msra.mxu0 0.0
        %1173 = vmatprep.subr.mxu0 0.0
        %1174 = vmatpush1.xpose.msra.mxu0 0.0
        %1175 = vmatprep.subr.mxu0 0.0
        %1176 = vmatpush1.xpose.msra.mxu0 0.0
        %1177 = vmatprep.subr.mxu0 0.0
        %1178 = vmatpush1.xpose.msra.mxu0 0.0
        %1179 = vmatprep.subr.mxu0 0.0
        %1180 = vmatpush1.xpose.msra.mxu0 0.0
        %1181 = vmatprep.subr.mxu0 0.0
        %1182 = vmatpush1.xpose.msra.mxu0 0.0
        %1183 = vmatprep.subr.mxu0 0.0
        %1184 = vmatpush1.xpose.msra.mxu0 0.0
        %1185 = vmatprep.subr.mxu0 0.0
        %1186 = vmatpush1.xpose.msra.mxu0 0.0
        %1187 = vmatprep.subr.mxu0 0.0
        %1188 = vmatpush1.xpose.msra.mxu0 0.0
        %1189 = vmatprep.subr.mxu0 0.0
        %1190 = vmatpush1.xpose.msra.mxu0 0.0
        %1191 = vmatprep.subr.mxu0 0.0
        %1192 = vmatpush1.xpose.msra.mxu0 0.0
        %1193 = vmatprep.subr.mxu0 0.0
        %1194 = vmatpush1.xpose.msra.mxu0 0.0
        %1195 = vmatprep.subr.mxu0 0.0
        %1196 = vmatpush1.xpose.msra.mxu0 0.0
        %1197 = vmatprep.subr.mxu0 0.0
        %1198 = vmatpush1.xpose.msra.mxu0 0.0
        %1199 = vmatprep.subr.mxu0 0.0
        %1200 = vmatpush1.xpose.msra.mxu0 0.0
        %1201 = vmatprep.subr.mxu0 0.0
        %1202 = vmatpush1.xpose.msra.mxu0 0.0
        %1203 = vmatprep.subr.mxu0 0.0
        %1204 = vmatpush1.xpose.msra.mxu0 0.0
        %1205 = vmatprep.subr.mxu0 0.0
        %1206 = vmatpush1.xpose.msra.mxu0 0.0
        %1207 = vmatprep.subr.mxu0 0.0
        %1208 = vmatpush1.xpose.msra.mxu0 0.0
        %1209 = vmatprep.mubr.f32.mxu0 0.0
        %1210 = vmatmul.mubr.f32.gmra.mrb[0].mxu0 %v1134
        %v1211 = vpop.f32.mrb[0].mxu0
        %v1212 = vadd.f32 0.0, %v1211
        %v1213 = vpop.f32.mrb[0].mxu0
        %1214 = vmatprep.mubr.f32.mxu0 0.0
        %1215 = vmatmul.mubr.f32.gmra.mrb[0].mxu0 %v1137
        %v1216 = vpop.f32.mrb[0].mxu0
        %v1217 = vadd.f32 0.0, %v1216
        %v1218 = vpop.f32.mrb[0].mxu0
        %1219 = vdwg.mxu0
        %v1220 = vmul.f32 %v1212, 0.25
        %v1221 = vmul.f32 %v1217, 0.25
        %v1222 = vsel %vm400, %v1220, -inf
        %1223 = vmax.xlane.f32.xlu0 %v1222
        %v1224 = vpop.xlane.xlu0 %1223
        %v1225 = vsel %vm400, %v1221, -inf
        %1226 = vmax.xlane.f32.xlu0 %v1225
        %v1227 = vpop.xlane.xlu0 %1226
        %v1228 = vsub.f32 %v1220, %v1224
        %v1229 = vsub.f32 %v1221, %v1227
        %v1230 = vmul.f32 %v1228, 1.442695
        %v1231 = vpow.pop %v1230
        %v1232 = vmul.f32 %v1229, 1.442695
        %v1233 = vpow.pop %v1232
        %v1234 = vsel %vm400, %v1231, 0.0
        %1235 = vadd.xlane.f32.xlu0 %v1234
        %v1236 = vpop.xlane.xlu0 %1235
        %v1237 = vsel %vm400, %v1233, 0.0
        %1238 = vadd.xlane.f32.xlu0 %v1237
        %v1239 = vpop.xlane.xlu0 %1238
        %v1240 = vrcp.pop %v1236
        %v1241 = vrcp.pop %v1239
        %v1242 = vmul.f32 %v1231, %v1240
        %v1243 = vmul.f32 %v1233, %v1241
        %v1247 = vsel %vm400, %v1242, 0
        %v1250 = vsel %vm400, %v1243, 0
        %1252 = vmatprep.subr.mxu0 0.0
        %1253 = vmatpush1.msra.mxu0 %v1027
        %1254 = vmatprep.subr.mxu0 0.0
        %1255 = vmatpush1.msra.mxu0 %v1029
        %1256 = vmatprep.subr.mxu0 0.0
        %1257 = vmatpush1.msra.mxu0 0.0
        %1258 = vmatprep.subr.mxu0 0.0
        %1259 = vmatpush1.msra.mxu0 0.0
        %1260 = vmatprep.subr.mxu0 0.0
        %1261 = vmatpush1.msra.mxu0 0.0
        %1262 = vmatprep.subr.mxu0 0.0
        %1263 = vmatpush1.msra.mxu0 0.0
        %1264 = vmatprep.subr.mxu0 0.0
        %1265 = vmatpush1.msra.mxu0 0.0
        %1266 = vmatprep.subr.mxu0 0.0
        %1267 = vmatpush1.msra.mxu0 0.0
        %1268 = vmatprep.subr.mxu0 0.0
        %1269 = vmatpush1.msra.mxu0 0.0
        %1270 = vmatprep.subr.mxu0 0.0
        %1271 = vmatpush1.msra.mxu0 0.0
        %1272 = vmatprep.subr.mxu0 0.0
        %1273 = vmatpush1.msra.mxu0 0.0
        %1274 = vmatprep.subr.mxu0 0.0
        %1275 = vmatpush1.msra.mxu0 0.0
        %1276 = vmatprep.subr.mxu0 0.0
        %1277 = vmatpush1.msra.mxu0 0.0
        %1278 = vmatprep.subr.mxu0 0.0
        %1279 = vmatpush1.msra.mxu0 0.0
        %1280 = vmatprep.subr.mxu0 0.0
        %1281 = vmatpush1.msra.mxu0 0.0
        %1282 = vmatprep.subr.mxu0 0.0
        %1283 = vmatpush1.msra.mxu0 0.0
        %1284 = vmatprep.subr.mxu0 0.0
        %1285 = vmatpush1.msra.mxu0 0.0
        %1286 = vmatprep.subr.mxu0 0.0
        %1287 = vmatpush1.msra.mxu0 0.0
        %1288 = vmatprep.subr.mxu0 0.0
        %1289 = vmatpush1.msra.mxu0 0.0
        %1290 = vmatprep.subr.mxu0 0.0
        %1291 = vmatpush1.msra.mxu0 0.0
        %1292 = vmatprep.subr.mxu0 0.0
        %1293 = vmatpush1.msra.mxu0 0.0
        %1294 = vmatprep.subr.mxu0 0.0
        %1295 = vmatpush1.msra.mxu0 0.0
        %1296 = vmatprep.subr.mxu0 0.0
        %1297 = vmatpush1.msra.mxu0 0.0
        %1298 = vmatprep.subr.mxu0 0.0
        %1299 = vmatpush1.msra.mxu0 0.0
        %1300 = vmatprep.subr.mxu0 0.0
        %1301 = vmatpush1.msra.mxu0 0.0
        %1302 = vmatprep.subr.mxu0 0.0
        %1303 = vmatpush1.msra.mxu0 0.0
        %1304 = vmatprep.subr.mxu0 0.0
        %1305 = vmatpush1.msra.mxu0 0.0
        %1306 = vmatprep.subr.mxu0 0.0
        %1307 = vmatpush1.msra.mxu0 0.0
        %1308 = vmatprep.subr.mxu0 0.0
        %1309 = vmatpush1.msra.mxu0 0.0
        %1310 = vmatprep.subr.mxu0 0.0
        %1311 = vmatpush1.msra.mxu0 0.0
        %1312 = vmatprep.subr.mxu0 0.0
        %1313 = vmatpush1.msra.mxu0 0.0
        %1314 = vmatprep.subr.mxu0 0.0
        %1315 = vmatpush1.msra.mxu0 0.0
        %1316 = vmatprep.mubr.f32.mxu0 0.0
        %1317 = vmatmul.mubr.f32.gmra.mrb[0].mxu0 %v1247
        %v1318 = vpop.f32.mrb[0].mxu0
        %v1319 = vadd.f32 0.0, %v1318
        %v1320 = vpop.f32.mrb[0].mxu0
        %1321 = vmatprep.mubr.f32.mxu0 0.0
        %1322 = vmatmul.mubr.f32.gmra.mrb[0].mxu0 %v1250
        %v1323 = vpop.f32.mrb[0].mxu0
        %v1324 = vadd.f32 0.0, %v1323
        %v1325 = vpop.f32.mrb[0].mxu0
        %1326 = vdwg.mxu0
        %1327 = vrot.lane.b32.xlu0 %v377, 32
        %v1328 = vpop.permute.xlu0 %1327
        %1329 = vrot.lane.b32.xlu0 %v383, 32
        %v1330 = vpop.permute.xlu0 %1329
        %v1331 = vsel %vm400, %v1328, 0
        %v1333 = vsel %vm400, %v1330, 0
        %1335 = vmatprep.subr.mxu0 0.0
        %1336 = vmatpush1.msra.mxu0 %v389
        %1337 = vmatprep.subr.mxu0 0.0
        %1338 = vmatpush1.msra.mxu0 %v390
        %1339 = vmatprep.subr.mxu0 0.0
        %1340 = vmatpush1.msra.mxu0 0.0
        %1341 = vmatprep.subr.mxu0 0.0
        %1342 = vmatpush1.msra.mxu0 0.0
        %1343 = vmatprep.subr.mxu0 0.0
        %1344 = vmatpush1.msra.mxu0 0.0
        %1345 = vmatprep.subr.mxu0 0.0
        %1346 = vmatpush1.msra.mxu0 0.0
        %1347 = vmatprep.subr.mxu0 0.0
        %1348 = vmatpush1.msra.mxu0 0.0
        %1349 = vmatprep.subr.mxu0 0.0
        %1350 = vmatpush1.msra.mxu0 0.0
        %1351 = vmatprep.subr.mxu0 0.0
        %1352 = vmatpush1.msra.mxu0 0.0
        %1353 = vmatprep.subr.mxu0 0.0
        %1354 = vmatpush1.msra.mxu0 0.0
        %1355 = vmatprep.subr.mxu0 0.0
        %1356 = vmatpush1.msra.mxu0 0.0
        %1357 = vmatprep.subr.mxu0 0.0
        %1358 = vmatpush1.msra.mxu0 0.0
        %1359 = vmatprep.subr.mxu0 0.0
        %1360 = vmatpush1.msra.mxu0 0.0
        %1361 = vmatprep.subr.mxu0 0.0
        %1362 = vmatpush1.msra.mxu0 0.0
        %1363 = vmatprep.subr.mxu0 0.0
        %1364 = vmatpush1.msra.mxu0 0.0
        %1365 = vmatprep.subr.mxu0 0.0
        %1366 = vmatpush1.msra.mxu0 0.0
        %1367 = vmatprep.subr.mxu0 0.0
        %1368 = vmatpush1.msra.mxu0 0.0
        %1369 = vmatprep.subr.mxu0 0.0
        %1370 = vmatpush1.msra.mxu0 0.0
        %1371 = vmatprep.subr.mxu0 0.0
        %1372 = vmatpush1.msra.mxu0 0.0
        %1373 = vmatprep.subr.mxu0 0.0
        %1374 = vmatpush1.msra.mxu0 0.0
        %1375 = vmatprep.subr.mxu0 0.0
        %1376 = vmatpush1.msra.mxu0 0.0
        %1377 = vmatprep.subr.mxu0 0.0
        %1378 = vmatpush1.msra.mxu0 0.0
        %1379 = vmatprep.subr.mxu0 0.0
        %1380 = vmatpush1.msra.mxu0 0.0
        %1381 = vmatprep.subr.mxu0 0.0
        %1382 = vmatpush1.msra.mxu0 0.0
        %1383 = vmatprep.subr.mxu0 0.0
        %1384 = vmatpush1.msra.mxu0 0.0
        %1385 = vmatprep.subr.mxu0 0.0
        %1386 = vmatpush1.msra.mxu0 0.0
        %1387 = vmatprep.subr.mxu0 0.0
        %1388 = vmatpush1.msra.mxu0 0.0
        %1389 = vmatprep.subr.mxu0 0.0
        %1390 = vmatpush1.msra.mxu0 0.0
        %1391 = vmatprep.subr.mxu0 0.0
        %1392 = vmatpush1.msra.mxu0 0.0
        %1393 = vmatprep.subr.mxu0 0.0
        %1394 = vmatpush1.msra.mxu0 0.0
        %1395 = vmatprep.subr.mxu0 0.0
        %1396 = vmatpush1.msra.mxu0 0.0
        %1397 = vmatprep.subr.mxu0 0.0
        %1398 = vmatpush1.msra.mxu0 0.0
        %1399 = vmatprep.mubr.f32.mxu0 0.0
        %1400 = vmatmul.mubr.f32.gmra.mrb[0].mxu0 %v1331
        %v1401 = vpop.f32.mrb[0].mxu0
        %v1402 = vadd.f32 0.0, %v1401
        %v1403 = vpop.f32.mrb[0].mxu0
        %1404 = vmatprep.mubr.f32.mxu0 0.0
        %1405 = vmatmul.mubr.f32.gmra.mrb[0].mxu0 %v1333
        %v1406 = vpop.f32.mrb[0].mxu0
        %v1407 = vadd.f32 0.0, %v1406
        %v1408 = vpop.f32.mrb[0].mxu0
        %1409 = vdwg.mxu0
        %1410 = vrot.lane.b32.xlu0 %v377, 96
        %v1411 = vpop.permute.xlu0 %1410
        %1412 = vrot.lane.b32.xlu0 %v383, 96
        %v1413 = vpop.permute.xlu0 %1412
        %v1414 = vsel %vm400, %v1411, 0
        %v1416 = vsel %vm400, %v1413, 0
        %1418 = vmatprep.subr.mxu0 0.0
        %1419 = vmatpush1.msra.mxu0 %v387
        %1420 = vmatprep.subr.mxu0 0.0
        %1421 = vmatpush1.msra.mxu0 %v388
        %1422 = vmatprep.subr.mxu0 0.0
        %1423 = vmatpush1.msra.mxu0 0.0
        %1424 = vmatprep.subr.mxu0 0.0
        %1425 = vmatpush1.msra.mxu0 0.0
        %1426 = vmatprep.subr.mxu0 0.0
        %1427 = vmatpush1.msra.mxu0 0.0
        %1428 = vmatprep.subr.mxu0 0.0
        %1429 = vmatpush1.msra.mxu0 0.0
        %1430 = vmatprep.subr.mxu0 0.0
        %1431 = vmatpush1.msra.mxu0 0.0
        %1432 = vmatprep.subr.mxu0 0.0
        %1433 = vmatpush1.msra.mxu0 0.0
        %1434 = vmatprep.subr.mxu0 0.0
        %1435 = vmatpush1.msra.mxu0 0.0
        %1436 = vmatprep.subr.mxu0 0.0
        %1437 = vmatpush1.msra.mxu0 0.0
        %1438 = vmatprep.subr.mxu0 0.0
        %1439 = vmatpush1.msra.mxu0 0.0
        %1440 = vmatprep.subr.mxu0 0.0
        %1441 = vmatpush1.msra.mxu0 0.0
        %1442 = vmatprep.subr.mxu0 0.0
        %1443 = vmatpush1.msra.mxu0 0.0
        %1444 = vmatprep.subr.mxu0 0.0
        %1445 = vmatpush1.msra.mxu0 0.0
        %1446 = vmatprep.subr.mxu0 0.0
        %1447 = vmatpush1.msra.mxu0 0.0
        %1448 = vmatprep.subr.mxu0 0.0
        %1449 = vmatpush1.msra.mxu0 0.0
        %1450 = vmatprep.subr.mxu0 0.0
        %1451 = vmatpush1.msra.mxu0 0.0
        %1452 = vmatprep.subr.mxu0 0.0
        %1453 = vmatpush1.msra.mxu0 0.0
        %1454 = vmatprep.subr.mxu0 0.0
        %1455 = vmatpush1.msra.mxu0 0.0
        %1456 = vmatprep.subr.mxu0 0.0
        %1457 = vmatpush1.msra.mxu0 0.0
        %1458 = vmatprep.subr.mxu0 0.0
        %1459 = vmatpush1.msra.mxu0 0.0
        %1460 = vmatprep.subr.mxu0 0.0
        %1461 = vmatpush1.msra.mxu0 0.0
        %1462 = vmatprep.subr.mxu0 0.0
        %1463 = vmatpush1.msra.mxu0 0.0
        %1464 = vmatprep.subr.mxu0 0.0
        %1465 = vmatpush1.msra.mxu0 0.0
        %1466 = vmatprep.subr.mxu0 0.0
        %1467 = vmatpush1.msra.mxu0 0.0
        %1468 = vmatprep.subr.mxu0 0.0
        %1469 = vmatpush1.msra.mxu0 0.0
        %1470 = vmatprep.subr.mxu0 0.0
        %1471 = vmatpush1.msra.mxu0 0.0
        %1472 = vmatprep.subr.mxu0 0.0
        %1473 = vmatpush1.msra.mxu0 0.0
        %1474 = vmatprep.subr.mxu0 0.0
        %1475 = vmatpush1.msra.mxu0 0.0
        %1476 = vmatprep.subr.mxu0 0.0
        %1477 = vmatpush1.msra.mxu0 0.0
        %1478 = vmatprep.subr.mxu0 0.0
        %1479 = vmatpush1.msra.mxu0 0.0
        %1480 = vmatprep.subr.mxu0 0.0
        %1481 = vmatpush1.msra.mxu0 0.0
        %1482 = vmatprep.mubr.f32.mxu0 0.0
        %1483 = vmatmul.mubr.f32.gmra.mrb[0].mxu0 %v1414
        %v1484 = vpop.f32.mrb[0].mxu0
        %v1485 = vadd.f32 %v1402, %v1484
        %v1486 = vpop.f32.mrb[0].mxu0
        %1487 = vmatprep.mubr.f32.mxu0 0.0
        %1488 = vmatmul.mubr.f32.gmra.mrb[0].mxu0 %v1416
        %v1489 = vpop.f32.mrb[0].mxu0
        %v1490 = vadd.f32 %v1407, %v1489
        %v1491 = vpop.f32.mrb[0].mxu0
        %1492 = vdwg.mxu0
        %1493 = vrot.lane.b32.xlu0 %v379, 96
        %v1494 = vpop.permute.xlu0 %1493
        %1495 = vrot.lane.b32.xlu0 %v385, 96
        %v1496 = vpop.permute.xlu0 %1495
        %v1497 = vsel %vm400, %v1494, 0
        %v1499 = vsel %vm400, %v1496, 0
        %1501 = vmatprep.subr.mxu0 0.0
        %1502 = vmatpush1.msra.mxu0 %v391
        %1503 = vmatprep.subr.mxu0 0.0
        %1504 = vmatpush1.msra.mxu0 %v392
        %1505 = vmatprep.subr.mxu0 0.0
        %1506 = vmatpush1.msra.mxu0 0.0
        %1507 = vmatprep.subr.mxu0 0.0
        %1508 = vmatpush1.msra.mxu0 0.0
        %1509 = vmatprep.subr.mxu0 0.0
        %1510 = vmatpush1.msra.mxu0 0.0
        %1511 = vmatprep.subr.mxu0 0.0
        %1512 = vmatpush1.msra.mxu0 0.0
        %1513 = vmatprep.subr.mxu0 0.0
        %1514 = vmatpush1.msra.mxu0 0.0
        %1515 = vmatprep.subr.mxu0 0.0
        %1516 = vmatpush1.msra.mxu0 0.0
        %1517 = vmatprep.subr.mxu0 0.0
        %1518 = vmatpush1.msra.mxu0 0.0
        %1519 = vmatprep.subr.mxu0 0.0
        %1520 = vmatpush1.msra.mxu0 0.0
        %1521 = vmatprep.subr.mxu0 0.0
        %1522 = vmatpush1.msra.mxu0 0.0
        %1523 = vmatprep.subr.mxu0 0.0
        %1524 = vmatpush1.msra.mxu0 0.0
        %1525 = vmatprep.subr.mxu0 0.0
        %1526 = vmatpush1.msra.mxu0 0.0
        %1527 = vmatprep.subr.mxu0 0.0
        %1528 = vmatpush1.msra.mxu0 0.0
        %1529 = vmatprep.subr.mxu0 0.0
        %1530 = vmatpush1.msra.mxu0 0.0
        %1531 = vmatprep.subr.mxu0 0.0
        %1532 = vmatpush1.msra.mxu0 0.0
        %1533 = vmatprep.subr.mxu0 0.0
        %1534 = vmatpush1.msra.mxu0 0.0
        %1535 = vmatprep.subr.mxu0 0.0
        %1536 = vmatpush1.msra.mxu0 0.0
        %1537 = vmatprep.subr.mxu0 0.0
        %1538 = vmatpush1.msra.mxu0 0.0
        %1539 = vmatprep.subr.mxu0 0.0
        %1540 = vmatpush1.msra.mxu0 0.0
        %1541 = vmatprep.subr.mxu0 0.0
        %1542 = vmatpush1.msra.mxu0 0.0
        %1543 = vmatprep.subr.mxu0 0.0
        %1544 = vmatpush1.msra.mxu0 0.0
        %1545 = vmatprep.subr.mxu0 0.0
        %1546 = vmatpush1.msra.mxu0 0.0
        %1547 = vmatprep.subr.mxu0 0.0
        %1548 = vmatpush1.msra.mxu0 0.0
        %1549 = vmatprep.subr.mxu0 0.0
        %1550 = vmatpush1.msra.mxu0 0.0
        %1551 = vmatprep.subr.mxu0 0.0
        %1552 = vmatpush1.msra.mxu0 0.0
        %1553 = vmatprep.subr.mxu0 0.0
        %1554 = vmatpush1.msra.mxu0 0.0
        %1555 = vmatprep.subr.mxu0 0.0
        %1556 = vmatpush1.msra.mxu0 0.0
        %1557 = vmatprep.subr.mxu0 0.0
        %1558 = vmatpush1.msra.mxu0 0.0
        %1559 = vmatprep.subr.mxu0 0.0
        %1560 = vmatpush1.msra.mxu0 0.0
        %1561 = vmatprep.subr.mxu0 0.0
        %1562 = vmatpush1.msra.mxu0 0.0
        %1563 = vmatprep.subr.mxu0 0.0
        %1564 = vmatpush1.msra.mxu0 0.0
        %1565 = vmatprep.mubr.f32.mxu0 0.0
        %1566 = vmatmul.mubr.f32.gmra.mrb[0].mxu0 %v1497
        %v1567 = vpop.f32.mrb[0].mxu0
        %v1568 = vadd.f32 0.0, %v1567
        %v1569 = vpop.f32.mrb[0].mxu0
        %1570 = vmatprep.mubr.f32.mxu0 0.0
        %1571 = vmatmul.mubr.f32.gmra.mrb[0].mxu0 %v1499
        %v1572 = vpop.f32.mrb[0].mxu0
        %v1573 = vadd.f32 0.0, %v1572
        %v1574 = vpop.f32.mrb[0].mxu0
        %1575 = vdwg.mxu0
        %v1576 = vadd.f32 %v1485, %v1568
        %v1577 = vadd.f32 %v1490, %v1573
        %v1578 = vadd.f32 %v1576, %v646
        %v1579 = vadd.f32 %v1577, %v646
        %v1580 = vxor.u32 %v1578, 2147483648
        %v1581 = vxor.u32 %v1579, 2147483648
        %v1582 = vmul.f32 %v1580, 1.442695
        %v1583 = vpow.pop %v1582
        %v1584 = vmul.f32 %v1581, 1.442695
        %v1585 = vpow.pop %v1584
        %v1586 = vadd.f32 %v1583, 1.0
        %v1587 = vadd.f32 %v1585, 1.0
        %v1588 = vrcp.pop %v1586
        %v1589 = vmul.f32 1.0, %v1588
        %v1590 = vrcp.pop %v1587
        %v1591 = vmul.f32 1.0, %v1590
        %v1594 = vmul.f32 %v1589, %v1411
        %v1595 = vmul.f32 %v1591, %v1413
        %v1598 = vmul.f32 %v1589, %v1328
        %v1599 = vmul.f32 %v1591, %v1330
        %v1601 = vsel %vm400, %v1594, 0
        %v1604 = vsel %vm400, %v1595, 0
        %v1607 = vsel %vm400, %v1598, 0
        %v1610 = vsel %vm400, %v1599, 0
        %1612 = vmatprep.subr.mxu0 0.0
        %1613 = vmatpush1.xpose.msra.mxu0 %v1607
        %1614 = vmatprep.subr.mxu0 0.0
        %1615 = vmatpush1.xpose.msra.mxu0 %v1610
        %1616 = vmatprep.subr.mxu0 0.0
        %1617 = vmatpush1.xpose.msra.mxu0 0.0
        %1618 = vmatprep.subr.mxu0 0.0
        %1619 = vmatpush1.xpose.msra.mxu0 0.0
        %1620 = vmatprep.subr.mxu0 0.0
        %1621 = vmatpush1.xpose.msra.mxu0 0.0
        %1622 = vmatprep.subr.mxu0 0.0
        %1623 = vmatpush1.xpose.msra.mxu0 0.0
        %1624 = vmatprep.subr.mxu0 0.0
        %1625 = vmatpush1.xpose.msra.mxu0 0.0
        %1626 = vmatprep.subr.mxu0 0.0
        %1627 = vmatpush1.xpose.msra.mxu0 0.0
        %1628 = vmatprep.subr.mxu0 0.0
        %1629 = vmatpush1.xpose.msra.mxu0 0.0
        %1630 = vmatprep.subr.mxu0 0.0
        %1631 = vmatpush1.xpose.msra.mxu0 0.0
        %1632 = vmatprep.subr.mxu0 0.0
        %1633 = vmatpush1.xpose.msra.mxu0 0.0
        %1634 = vmatprep.subr.mxu0 0.0
        %1635 = vmatpush1.xpose.msra.mxu0 0.0
        %1636 = vmatprep.subr.mxu0 0.0
        %1637 = vmatpush1.xpose.msra.mxu0 0.0
        %1638 = vmatprep.subr.mxu0 0.0
        %1639 = vmatpush1.xpose.msra.mxu0 0.0
        %1640 = vmatprep.subr.mxu0 0.0
        %1641 = vmatpush1.xpose.msra.mxu0 0.0
        %1642 = vmatprep.subr.mxu0 0.0
        %1643 = vmatpush1.xpose.msra.mxu0 0.0
        %1644 = vmatprep.subr.mxu0 0.0
        %1645 = vmatpush1.xpose.msra.mxu0 0.0
        %1646 = vmatprep.subr.mxu0 0.0
        %1647 = vmatpush1.xpose.msra.mxu0 0.0
        %1648 = vmatprep.subr.mxu0 0.0
        %1649 = vmatpush1.xpose.msra.mxu0 0.0
        %1650 = vmatprep.subr.mxu0 0.0
        %1651 = vmatpush1.xpose.msra.mxu0 0.0
        %1652 = vmatprep.subr.mxu0 0.0
        %1653 = vmatpush1.xpose.msra.mxu0 0.0
        %1654 = vmatprep.subr.mxu0 0.0
        %1655 = vmatpush1.xpose.msra.mxu0 0.0
        %1656 = vmatprep.subr.mxu0 0.0
        %1657 = vmatpush1.xpose.msra.mxu0 0.0
        %1658 = vmatprep.subr.mxu0 0.0
        %1659 = vmatpush1.xpose.msra.mxu0 0.0
        %1660 = vmatprep.subr.mxu0 0.0
        %1661 = vmatpush1.xpose.msra.mxu0 0.0
        %1662 = vmatprep.subr.mxu0 0.0
        %1663 = vmatpush1.xpose.msra.mxu0 0.0
        %1664 = vmatprep.subr.mxu0 0.0
        %1665 = vmatpush1.xpose.msra.mxu0 0.0
        %1666 = vmatprep.subr.mxu0 0.0
        %1667 = vmatpush1.xpose.msra.mxu0 0.0
        %1668 = vmatprep.subr.mxu0 0.0
        %1669 = vmatpush1.xpose.msra.mxu0 0.0
        %1670 = vmatprep.subr.mxu0 0.0
        %1671 = vmatpush1.xpose.msra.mxu0 0.0
        %1672 = vmatprep.subr.mxu0 0.0
        %1673 = vmatpush1.xpose.msra.mxu0 0.0
        %1674 = vmatprep.subr.mxu0 0.0
        %1675 = vmatpush1.xpose.msra.mxu0 0.0
        %1676 = vmatprep.mubr.f32.mxu0 0.0
        %1677 = vmatmul.mubr.f32.gmra.mrb[0].mxu0 %v1601
        %v1678 = vpop.f32.mrb[0].mxu0
        %v1679 = vadd.f32 0.0, %v1678
        %v1680 = vpop.f32.mrb[0].mxu0
        %1681 = vmatprep.mubr.f32.mxu0 0.0
        %1682 = vmatmul.mubr.f32.gmra.mrb[0].mxu0 %v1604
        %v1683 = vpop.f32.mrb[0].mxu0
        %v1684 = vadd.f32 0.0, %v1683
        %v1685 = vpop.f32.mrb[0].mxu0
        %1686 = vdwg.mxu0
        %v1687 = vmul.f32 %v1679, 0.25
        %v1688 = vmul.f32 %v1684, 0.25
        %v1689 = vsel %vm400, %v1687, -inf
        %1690 = vmax.xlane.f32.xlu0 %v1689
        %v1691 = vpop.xlane.xlu0 %1690
        %v1692 = vsel %vm400, %v1688, -inf
        %1693 = vmax.xlane.f32.xlu0 %v1692
        %v1694 = vpop.xlane.xlu0 %1693
        %v1695 = vsub.f32 %v1687, %v1691
        %v1696 = vsub.f32 %v1688, %v1694
        %v1697 = vmul.f32 %v1695, 1.442695
        %v1698 = vpow.pop %v1697
        %v1699 = vmul.f32 %v1696, 1.442695
        %v1700 = vpow.pop %v1699
        %v1701 = vsel %vm400, %v1698, 0.0
        %1702 = vadd.xlane.f32.xlu0 %v1701
        %v1703 = vpop.xlane.xlu0 %1702
        %v1704 = vsel %vm400, %v1700, 0.0
        %1705 = vadd.xlane.f32.xlu0 %v1704
        %v1706 = vpop.xlane.xlu0 %1705
        %v1707 = vrcp.pop %v1703
        %v1708 = vrcp.pop %v1706
        %v1709 = vmul.f32 %v1698, %v1707
        %v1710 = vmul.f32 %v1700, %v1708
        %v1714 = vsel %vm400, %v1709, 0
        %v1717 = vsel %vm400, %v1710, 0
        %1719 = vmatprep.subr.mxu0 0.0
        %1720 = vmatpush1.msra.mxu0 %v1494
        %1721 = vmatprep.subr.mxu0 0.0
        %1722 = vmatpush1.msra.mxu0 %v1496
        %1723 = vmatprep.subr.mxu0 0.0
        %1724 = vmatpush1.msra.mxu0 0.0
        %1725 = vmatprep.subr.mxu0 0.0
        %1726 = vmatpush1.msra.mxu0 0.0
        %1727 = vmatprep.subr.mxu0 0.0
        %1728 = vmatpush1.msra.mxu0 0.0
        %1729 = vmatprep.subr.mxu0 0.0
        %1730 = vmatpush1.msra.mxu0 0.0
        %1731 = vmatprep.subr.mxu0 0.0
        %1732 = vmatpush1.msra.mxu0 0.0
        %1733 = vmatprep.subr.mxu0 0.0
        %1734 = vmatpush1.msra.mxu0 0.0
        %1735 = vmatprep.subr.mxu0 0.0
        %1736 = vmatpush1.msra.mxu0 0.0
        %1737 = vmatprep.subr.mxu0 0.0
        %1738 = vmatpush1.msra.mxu0 0.0
        %1739 = vmatprep.subr.mxu0 0.0
        %1740 = vmatpush1.msra.mxu0 0.0
        %1741 = vmatprep.subr.mxu0 0.0
        %1742 = vmatpush1.msra.mxu0 0.0
        %1743 = vmatprep.subr.mxu0 0.0
        %1744 = vmatpush1.msra.mxu0 0.0
        %1745 = vmatprep.subr.mxu0 0.0
        %1746 = vmatpush1.msra.mxu0 0.0
        %1747 = vmatprep.subr.mxu0 0.0
        %1748 = vmatpush1.msra.mxu0 0.0
        %1749 = vmatprep.subr.mxu0 0.0
        %1750 = vmatpush1.msra.mxu0 0.0
        %1751 = vmatprep.subr.mxu0 0.0
        %1752 = vmatpush1.msra.mxu0 0.0
        %1753 = vmatprep.subr.mxu0 0.0
        %1754 = vmatpush1.msra.mxu0 0.0
        %1755 = vmatprep.subr.mxu0 0.0
        %1756 = vmatpush1.msra.mxu0 0.0
        %1757 = vmatprep.subr.mxu0 0.0
        %1758 = vmatpush1.msra.mxu0 0.0
        %1759 = vmatprep.subr.mxu0 0.0
        %1760 = vmatpush1.msra.mxu0 0.0
        %1761 = vmatprep.subr.mxu0 0.0
        %1762 = vmatpush1.msra.mxu0 0.0
        %1763 = vmatprep.subr.mxu0 0.0
        %1764 = vmatpush1.msra.mxu0 0.0
        %1765 = vmatprep.subr.mxu0 0.0
        %1766 = vmatpush1.msra.mxu0 0.0
        %1767 = vmatprep.subr.mxu0 0.0
        %1768 = vmatpush1.msra.mxu0 0.0
        %1769 = vmatprep.subr.mxu0 0.0
        %1770 = vmatpush1.msra.mxu0 0.0
        %1771 = vmatprep.subr.mxu0 0.0
        %1772 = vmatpush1.msra.mxu0 0.0
        %1773 = vmatprep.subr.mxu0 0.0
        %1774 = vmatpush1.msra.mxu0 0.0
        %1775 = vmatprep.subr.mxu0 0.0
        %1776 = vmatpush1.msra.mxu0 0.0
        %1777 = vmatprep.subr.mxu0 0.0
        %1778 = vmatpush1.msra.mxu0 0.0
        %1779 = vmatprep.subr.mxu0 0.0
        %1780 = vmatpush1.msra.mxu0 0.0
        %1781 = vmatprep.subr.mxu0 0.0
        %1782 = vmatpush1.msra.mxu0 0.0
        %1783 = vmatprep.mubr.f32.mxu0 0.0
        %1784 = vmatmul.mubr.f32.gmra.mrb[0].mxu0 %v1714
        %v1785 = vpop.f32.mrb[0].mxu0
        %v1786 = vadd.f32 0.0, %v1785
        %v1787 = vpop.f32.mrb[0].mxu0
        %1788 = vmatprep.mubr.f32.mxu0 0.0
        %1789 = vmatmul.mubr.f32.gmra.mrb[0].mxu0 %v1717
        %v1790 = vpop.f32.mrb[0].mxu0
        %v1791 = vadd.f32 0.0, %v1790
        %v1792 = vpop.f32.mrb[0].mxu0
        %1793 = vdwg.mxu0
        %1794 = vrot.lane.b32.xlu0 %v377, 16
        %v1795 = vpop.permute.xlu0 %1794
        %1796 = vrot.lane.b32.xlu0 %v383, 16
        %v1797 = vpop.permute.xlu0 %1796
        %v1798 = vsel %vm400, %v1795, 0
        %v1800 = vsel %vm400, %v1797, 0
        %1802 = vmatprep.subr.mxu0 0.0
        %1803 = vmatpush1.msra.mxu0 %v389
        %1804 = vmatprep.subr.mxu0 0.0
        %1805 = vmatpush1.msra.mxu0 %v390
        %1806 = vmatprep.subr.mxu0 0.0
        %1807 = vmatpush1.msra.mxu0 0.0
        %1808 = vmatprep.subr.mxu0 0.0
        %1809 = vmatpush1.msra.mxu0 0.0
        %1810 = vmatprep.subr.mxu0 0.0
        %1811 = vmatpush1.msra.mxu0 0.0
        %1812 = vmatprep.subr.mxu0 0.0
        %1813 = vmatpush1.msra.mxu0 0.0
        %1814 = vmatprep.subr.mxu0 0.0
        %1815 = vmatpush1.msra.mxu0 0.0
        %1816 = vmatprep.subr.mxu0 0.0
        %1817 = vmatpush1.msra.mxu0 0.0
        %1818 = vmatprep.subr.mxu0 0.0
        %1819 = vmatpush1.msra.mxu0 0.0
        %1820 = vmatprep.subr.mxu0 0.0
        %1821 = vmatpush1.msra.mxu0 0.0
        %1822 = vmatprep.subr.mxu0 0.0
        %1823 = vmatpush1.msra.mxu0 0.0
        %1824 = vmatprep.subr.mxu0 0.0
        %1825 = vmatpush1.msra.mxu0 0.0
        %1826 = vmatprep.subr.mxu0 0.0
        %1827 = vmatpush1.msra.mxu0 0.0
        %1828 = vmatprep.subr.mxu0 0.0
        %1829 = vmatpush1.msra.mxu0 0.0
        %1830 = vmatprep.subr.mxu0 0.0
        %1831 = vmatpush1.msra.mxu0 0.0
        %1832 = vmatprep.subr.mxu0 0.0
        %1833 = vmatpush1.msra.mxu0 0.0
        %1834 = vmatprep.subr.mxu0 0.0
        %1835 = vmatpush1.msra.mxu0 0.0
        %1836 = vmatprep.subr.mxu0 0.0
        %1837 = vmatpush1.msra.mxu0 0.0
        %1838 = vmatprep.subr.mxu0 0.0
        %1839 = vmatpush1.msra.mxu0 0.0
        %1840 = vmatprep.subr.mxu0 0.0
        %1841 = vmatpush1.msra.mxu0 0.0
        %1842 = vmatprep.subr.mxu0 0.0
        %1843 = vmatpush1.msra.mxu0 0.0
        %1844 = vmatprep.subr.mxu0 0.0
        %1845 = vmatpush1.msra.mxu0 0.0
        %1846 = vmatprep.subr.mxu0 0.0
        %1847 = vmatpush1.msra.mxu0 0.0
        %1848 = vmatprep.subr.mxu0 0.0
        %1849 = vmatpush1.msra.mxu0 0.0
        %1850 = vmatprep.subr.mxu0 0.0
        %1851 = vmatpush1.msra.mxu0 0.0
        %1852 = vmatprep.subr.mxu0 0.0
        %1853 = vmatpush1.msra.mxu0 0.0
        %1854 = vmatprep.subr.mxu0 0.0
        %1855 = vmatpush1.msra.mxu0 0.0
        %1856 = vmatprep.subr.mxu0 0.0
        %1857 = vmatpush1.msra.mxu0 0.0
        %1858 = vmatprep.subr.mxu0 0.0
        %1859 = vmatpush1.msra.mxu0 0.0
        %1860 = vmatprep.subr.mxu0 0.0
        %1861 = vmatpush1.msra.mxu0 0.0
        %1862 = vmatprep.subr.mxu0 0.0
        %1863 = vmatpush1.msra.mxu0 0.0
        %1864 = vmatprep.subr.mxu0 0.0
        %1865 = vmatpush1.msra.mxu0 0.0
        %1866 = vmatprep.mubr.f32.mxu0 0.0
        %1867 = vmatmul.mubr.f32.gmra.mrb[0].mxu0 %v1798
        %v1868 = vpop.f32.mrb[0].mxu0
        %v1869 = vadd.f32 0.0, %v1868
        %v1870 = vpop.f32.mrb[0].mxu0
        %1871 = vmatprep.mubr.f32.mxu0 0.0
        %1872 = vmatmul.mubr.f32.gmra.mrb[0].mxu0 %v1800
        %v1873 = vpop.f32.mrb[0].mxu0
        %v1874 = vadd.f32 0.0, %v1873
        %v1875 = vpop.f32.mrb[0].mxu0
        %1876 = vdwg.mxu0
        %1877 = vrot.lane.b32.xlu0 %v377, 80
        %v1878 = vpop.permute.xlu0 %1877
        %1879 = vrot.lane.b32.xlu0 %v383, 80
        %v1880 = vpop.permute.xlu0 %1879
        %v1881 = vsel %vm400, %v1878, 0
        %v1883 = vsel %vm400, %v1880, 0
        %1885 = vmatprep.subr.mxu0 0.0
        %1886 = vmatpush1.msra.mxu0 %v387
        %1887 = vmatprep.subr.mxu0 0.0
        %1888 = vmatpush1.msra.mxu0 %v388
        %1889 = vmatprep.subr.mxu0 0.0
        %1890 = vmatpush1.msra.mxu0 0.0
        %1891 = vmatprep.subr.mxu0 0.0
        %1892 = vmatpush1.msra.mxu0 0.0
        %1893 = vmatprep.subr.mxu0 0.0
        %1894 = vmatpush1.msra.mxu0 0.0
        %1895 = vmatprep.subr.mxu0 0.0
        %1896 = vmatpush1.msra.mxu0 0.0
        %1897 = vmatprep.subr.mxu0 0.0
        %1898 = vmatpush1.msra.mxu0 0.0
        %1899 = vmatprep.subr.mxu0 0.0
        %1900 = vmatpush1.msra.mxu0 0.0
        %1901 = vmatprep.subr.mxu0 0.0
        %1902 = vmatpush1.msra.mxu0 0.0
        %1903 = vmatprep.subr.mxu0 0.0
        %1904 = vmatpush1.msra.mxu0 0.0
        %1905 = vmatprep.subr.mxu0 0.0
        %1906 = vmatpush1.msra.mxu0 0.0
        %1907 = vmatprep.subr.mxu0 0.0
        %1908 = vmatpush1.msra.mxu0 0.0
        %1909 = vmatprep.subr.mxu0 0.0
        %1910 = vmatpush1.msra.mxu0 0.0
        %1911 = vmatprep.subr.mxu0 0.0
        %1912 = vmatpush1.msra.mxu0 0.0
        %1913 = vmatprep.subr.mxu0 0.0
        %1914 = vmatpush1.msra.mxu0 0.0
        %1915 = vmatprep.subr.mxu0 0.0
        %1916 = vmatpush1.msra.mxu0 0.0
        %1917 = vmatprep.subr.mxu0 0.0
        %1918 = vmatpush1.msra.mxu0 0.0
        %1919 = vmatprep.subr.mxu0 0.0
        %1920 = vmatpush1.msra.mxu0 0.0
        %1921 = vmatprep.subr.mxu0 0.0
        %1922 = vmatpush1.msra.mxu0 0.0
        %1923 = vmatprep.subr.mxu0 0.0
        %1924 = vmatpush1.msra.mxu0 0.0
        %1925 = vmatprep.subr.mxu0 0.0
        %1926 = vmatpush1.msra.mxu0 0.0
        %1927 = vmatprep.subr.mxu0 0.0
        %1928 = vmatpush1.msra.mxu0 0.0
        %1929 = vmatprep.subr.mxu0 0.0
        %1930 = vmatpush1.msra.mxu0 0.0
        %1931 = vmatprep.subr.mxu0 0.0
        %1932 = vmatpush1.msra.mxu0 0.0
        %1933 = vmatprep.subr.mxu0 0.0
        %1934 = vmatpush1.msra.mxu0 0.0
        %1935 = vmatprep.subr.mxu0 0.0
        %1936 = vmatpush1.msra.mxu0 0.0
        %1937 = vmatprep.subr.mxu0 0.0
        %1938 = vmatpush1.msra.mxu0 0.0
        %1939 = vmatprep.subr.mxu0 0.0
        %1940 = vmatpush1.msra.mxu0 0.0
        %1941 = vmatprep.subr.mxu0 0.0
        %1942 = vmatpush1.msra.mxu0 0.0
        %1943 = vmatprep.subr.mxu0 0.0
        %1944 = vmatpush1.msra.mxu0 0.0
        %1945 = vmatprep.subr.mxu0 0.0
        %1946 = vmatpush1.msra.mxu0 0.0
        %1947 = vmatprep.subr.mxu0 0.0
        %1948 = vmatpush1.msra.mxu0 0.0
        %1949 = vmatprep.mubr.f32.mxu0 0.0
        %1950 = vmatmul.mubr.f32.gmra.mrb[0].mxu0 %v1881
        %v1951 = vpop.f32.mrb[0].mxu0
        %v1952 = vadd.f32 %v1869, %v1951
        %v1953 = vpop.f32.mrb[0].mxu0
        %1954 = vmatprep.mubr.f32.mxu0 0.0
        %1955 = vmatmul.mubr.f32.gmra.mrb[0].mxu0 %v1883
        %v1956 = vpop.f32.mrb[0].mxu0
        %v1957 = vadd.f32 %v1874, %v1956
        %v1958 = vpop.f32.mrb[0].mxu0
        %1959 = vdwg.mxu0
        %1960 = vrot.lane.b32.xlu0 %v379, 80
        %v1961 = vpop.permute.xlu0 %1960
        %1962 = vrot.lane.b32.xlu0 %v385, 80
        %v1963 = vpop.permute.xlu0 %1962
        %v1964 = vsel %vm400, %v1961, 0
        %v1966 = vsel %vm400, %v1963, 0
        %1968 = vmatprep.subr.mxu0 0.0
        %1969 = vmatpush1.msra.mxu0 %v391
        %1970 = vmatprep.subr.mxu0 0.0
        %1971 = vmatpush1.msra.mxu0 %v392
        %1972 = vmatprep.subr.mxu0 0.0
        %1973 = vmatpush1.msra.mxu0 0.0
        %1974 = vmatprep.subr.mxu0 0.0
        %1975 = vmatpush1.msra.mxu0 0.0
        %1976 = vmatprep.subr.mxu0 0.0
        %1977 = vmatpush1.msra.mxu0 0.0
        %1978 = vmatprep.subr.mxu0 0.0
        %1979 = vmatpush1.msra.mxu0 0.0
        %1980 = vmatprep.subr.mxu0 0.0
        %1981 = vmatpush1.msra.mxu0 0.0
        %1982 = vmatprep.subr.mxu0 0.0
        %1983 = vmatpush1.msra.mxu0 0.0
        %1984 = vmatprep.subr.mxu0 0.0
        %1985 = vmatpush1.msra.mxu0 0.0
        %1986 = vmatprep.subr.mxu0 0.0
        %1987 = vmatpush1.msra.mxu0 0.0
        %1988 = vmatprep.subr.mxu0 0.0
        %1989 = vmatpush1.msra.mxu0 0.0
        %1990 = vmatprep.subr.mxu0 0.0
        %1991 = vmatpush1.msra.mxu0 0.0
        %1992 = vmatprep.subr.mxu0 0.0
        %1993 = vmatpush1.msra.mxu0 0.0
        %1994 = vmatprep.subr.mxu0 0.0
        %1995 = vmatpush1.msra.mxu0 0.0
        %1996 = vmatprep.subr.mxu0 0.0
        %1997 = vmatpush1.msra.mxu0 0.0
        %1998 = vmatprep.subr.mxu0 0.0
        %1999 = vmatpush1.msra.mxu0 0.0
        %2000 = vmatprep.subr.mxu0 0.0
        %2001 = vmatpush1.msra.mxu0 0.0
        %2002 = vmatprep.subr.mxu0 0.0
        %2003 = vmatpush1.msra.mxu0 0.0
        %2004 = vmatprep.subr.mxu0 0.0
        %2005 = vmatpush1.msra.mxu0 0.0
        %2006 = vmatprep.subr.mxu0 0.0
        %2007 = vmatpush1.msra.mxu0 0.0
        %2008 = vmatprep.subr.mxu0 0.0
        %2009 = vmatpush1.msra.mxu0 0.0
        %2010 = vmatprep.subr.mxu0 0.0
        %2011 = vmatpush1.msra.mxu0 0.0
        %2012 = vmatprep.subr.mxu0 0.0
        %2013 = vmatpush1.msra.mxu0 0.0
        %2014 = vmatprep.subr.mxu0 0.0
        %2015 = vmatpush1.msra.mxu0 0.0
        %2016 = vmatprep.subr.mxu0 0.0
        %2017 = vmatpush1.msra.mxu0 0.0
        %2018 = vmatprep.subr.mxu0 0.0
        %2019 = vmatpush1.msra.mxu0 0.0
        %2020 = vmatprep.subr.mxu0 0.0
        %2021 = vmatpush1.msra.mxu0 0.0
        %2022 = vmatprep.subr.mxu0 0.0
        %2023 = vmatpush1.msra.mxu0 0.0
        %2024 = vmatprep.subr.mxu0 0.0
        %2025 = vmatpush1.msra.mxu0 0.0
        %2026 = vmatprep.subr.mxu0 0.0
        %2027 = vmatpush1.msra.mxu0 0.0
        %2028 = vmatprep.subr.mxu0 0.0
        %2029 = vmatpush1.msra.mxu0 0.0
        %2030 = vmatprep.subr.mxu0 0.0
        %2031 = vmatpush1.msra.mxu0 0.0
        %2032 = vmatprep.mubr.f32.mxu0 0.0
        %2033 = vmatmul.mubr.f32.gmra.mrb[0].mxu0 %v1964
        %v2034 = vpop.f32.mrb[0].mxu0
        %v2035 = vadd.f32 0.0, %v2034
        %v2036 = vpop.f32.mrb[0].mxu0
        %2037 = vmatprep.mubr.f32.mxu0 0.0
        %2038 = vmatmul.mubr.f32.gmra.mrb[0].mxu0 %v1966
        %v2039 = vpop.f32.mrb[0].mxu0
        %v2040 = vadd.f32 0.0, %v2039
        %v2041 = vpop.f32.mrb[0].mxu0
        %2042 = vdwg.mxu0
        %v2043 = vadd.f32 %v1952, %v2035
        %v2044 = vadd.f32 %v1957, %v2040
        %v2045 = vadd.f32 %v2043, %v646
        %v2046 = vadd.f32 %v2044, %v646
        %v2047 = vxor.u32 %v2045, 2147483648
        %v2048 = vxor.u32 %v2046, 2147483648
        %v2049 = vmul.f32 %v2047, 1.442695
        %v2050 = vpow.pop %v2049
        %v2051 = vmul.f32 %v2048, 1.442695
        %v2052 = vpow.pop %v2051
        %v2053 = vadd.f32 %v2050, 1.0
        %v2054 = vadd.f32 %v2052, 1.0
        %v2055 = vrcp.pop %v2053
        %v2056 = vmul.f32 1.0, %v2055
        %v2057 = vrcp.pop %v2054
        %v2058 = vmul.f32 1.0, %v2057
        %v2061 = vmul.f32 %v2056, %v1878
        %v2062 = vmul.f32 %v2058, %v1880
        %v2065 = vmul.f32 %v2056, %v1795
        %v2066 = vmul.f32 %v2058, %v1797
        %v2068 = vsel %vm400, %v2061, 0
        %v2071 = vsel %vm400, %v2062, 0
        %v2074 = vsel %vm400, %v2065, 0
        %v2077 = vsel %vm400, %v2066, 0
        %2079 = vmatprep.subr.mxu0 0.0
        %2080 = vmatpush1.xpose.msra.mxu0 %v2074
        %2081 = vmatprep.subr.mxu0 0.0
        %2082 = vmatpush1.xpose.msra.mxu0 %v2077
        %2083 = vmatprep.subr.mxu0 0.0
        %2084 = vmatpush1.xpose.msra.mxu0 0.0
        %2085 = vmatprep.subr.mxu0 0.0
        %2086 = vmatpush1.xpose.msra.mxu0 0.0
        %2087 = vmatprep.subr.mxu0 0.0
        %2088 = vmatpush1.xpose.msra.mxu0 0.0
        %2089 = vmatprep.subr.mxu0 0.0
        %2090 = vmatpush1.xpose.msra.mxu0 0.0
        %2091 = vmatprep.subr.mxu0 0.0
        %2092 = vmatpush1.xpose.msra.mxu0 0.0
        %2093 = vmatprep.subr.mxu0 0.0
        %2094 = vmatpush1.xpose.msra.mxu0 0.0
        %2095 = vmatprep.subr.mxu0 0.0
        %2096 = vmatpush1.xpose.msra.mxu0 0.0
        %2097 = vmatprep.subr.mxu0 0.0
        %2098 = vmatpush1.xpose.msra.mxu0 0.0
        %2099 = vmatprep.subr.mxu0 0.0
        %2100 = vmatpush1.xpose.msra.mxu0 0.0
        %2101 = vmatprep.subr.mxu0 0.0
        %2102 = vmatpush1.xpose.msra.mxu0 0.0
        %2103 = vmatprep.subr.mxu0 0.0
        %2104 = vmatpush1.xpose.msra.mxu0 0.0
        %2105 = vmatprep.subr.mxu0 0.0
        %2106 = vmatpush1.xpose.msra.mxu0 0.0
        %2107 = vmatprep.subr.mxu0 0.0
        %2108 = vmatpush1.xpose.msra.mxu0 0.0
        %2109 = vmatprep.subr.mxu0 0.0
        %2110 = vmatpush1.xpose.msra.mxu0 0.0
        %2111 = vmatprep.subr.mxu0 0.0
        %2112 = vmatpush1.xpose.msra.mxu0 0.0
        %2113 = vmatprep.subr.mxu0 0.0
        %2114 = vmatpush1.xpose.msra.mxu0 0.0
        %2115 = vmatprep.subr.mxu0 0.0
        %2116 = vmatpush1.xpose.msra.mxu0 0.0
        %2117 = vmatprep.subr.mxu0 0.0
        %2118 = vmatpush1.xpose.msra.mxu0 0.0
        %2119 = vmatprep.subr.mxu0 0.0
        %2120 = vmatpush1.xpose.msra.mxu0 0.0
        %2121 = vmatprep.subr.mxu0 0.0
        %2122 = vmatpush1.xpose.msra.mxu0 0.0
        %2123 = vmatprep.subr.mxu0 0.0
        %2124 = vmatpush1.xpose.msra.mxu0 0.0
        %2125 = vmatprep.subr.mxu0 0.0
        %2126 = vmatpush1.xpose.msra.mxu0 0.0
        %2127 = vmatprep.subr.mxu0 0.0
        %2128 = vmatpush1.xpose.msra.mxu0 0.0
        %2129 = vmatprep.subr.mxu0 0.0
        %2130 = vmatpush1.xpose.msra.mxu0 0.0
        %2131 = vmatprep.subr.mxu0 0.0
        %2132 = vmatpush1.xpose.msra.mxu0 0.0
        %2133 = vmatprep.subr.mxu0 0.0
        %2134 = vmatpush1.xpose.msra.mxu0 0.0
        %2135 = vmatprep.subr.mxu0 0.0
        %2136 = vmatpush1.xpose.msra.mxu0 0.0
        %2137 = vmatprep.subr.mxu0 0.0
        %2138 = vmatpush1.xpose.msra.mxu0 0.0
        %2139 = vmatprep.subr.mxu0 0.0
        %2140 = vmatpush1.xpose.msra.mxu0 0.0
        %2141 = vmatprep.subr.mxu0 0.0
        %2142 = vmatpush1.xpose.msra.mxu0 0.0
        %2143 = vmatprep.mubr.f32.mxu0 0.0
        %2144 = vmatmul.mubr.f32.gmra.mrb[0].mxu0 %v2068
        %v2145 = vpop.f32.mrb[0].mxu0
        %v2146 = vadd.f32 0.0, %v2145
        %v2147 = vpop.f32.mrb[0].mxu0
        %2148 = vmatprep.mubr.f32.mxu0 0.0
        %2149 = vmatmul.mubr.f32.gmra.mrb[0].mxu0 %v2071
        %v2150 = vpop.f32.mrb[0].mxu0
        %v2151 = vadd.f32 0.0, %v2150
        %v2152 = vpop.f32.mrb[0].mxu0
        %2153 = vdwg.mxu0
        %v2154 = vmul.f32 %v2146, 0.25
        %v2155 = vmul.f32 %v2151, 0.25
        %v2156 = vsel %vm400, %v2154, -inf
        %2157 = vmax.xlane.f32.xlu0 %v2156
        %v2158 = vpop.xlane.xlu0 %2157
        %v2159 = vsel %vm400, %v2155, -inf
        %2160 = vmax.xlane.f32.xlu0 %v2159
        %v2161 = vpop.xlane.xlu0 %2160
        %v2162 = vsub.f32 %v2154, %v2158
        %v2163 = vsub.f32 %v2155, %v2161
        %v2164 = vmul.f32 %v2162, 1.442695
        %v2165 = vpow.pop %v2164
        %v2166 = vmul.f32 %v2163, 1.442695
        %v2167 = vpow.pop %v2166
        %v2168 = vsel %vm400, %v2165, 0.0
        %2169 = vadd.xlane.f32.xlu0 %v2168
        %v2170 = vpop.xlane.xlu0 %2169
        %v2171 = vsel %vm400, %v2167, 0.0
        %2172 = vadd.xlane.f32.xlu0 %v2171
        %v2173 = vpop.xlane.xlu0 %2172
        %v2174 = vrcp.pop %v2170
        %v2175 = vrcp.pop %v2173
        %v2176 = vmul.f32 %v2165, %v2174
        %v2177 = vmul.f32 %v2167, %v2175
        %v2181 = vsel %vm400, %v2176, 0
        %v2184 = vsel %vm400, %v2177, 0
        %2186 = vmatprep.subr.mxu0 0.0
        %2187 = vmatpush1.msra.mxu0 %v1961
        %2188 = vmatprep.subr.mxu0 0.0
        %2189 = vmatpush1.msra.mxu0 %v1963
        %2190 = vmatprep.subr.mxu0 0.0
        %2191 = vmatpush1.msra.mxu0 0.0
        %2192 = vmatprep.subr.mxu0 0.0
        %2193 = vmatpush1.msra.mxu0 0.0
        %2194 = vmatprep.subr.mxu0 0.0
        %2195 = vmatpush1.msra.mxu0 0.0
        %2196 = vmatprep.subr.mxu0 0.0
        %2197 = vmatpush1.msra.mxu0 0.0
        %2198 = vmatprep.subr.mxu0 0.0
        %2199 = vmatpush1.msra.mxu0 0.0
        %2200 = vmatprep.subr.mxu0 0.0
        %2201 = vmatpush1.msra.mxu0 0.0
        %2202 = vmatprep.subr.mxu0 0.0
        %2203 = vmatpush1.msra.mxu0 0.0
        %2204 = vmatprep.subr.mxu0 0.0
        %2205 = vmatpush1.msra.mxu0 0.0
        %2206 = vmatprep.subr.mxu0 0.0
        %2207 = vmatpush1.msra.mxu0 0.0
        %2208 = vmatprep.subr.mxu0 0.0
        %2209 = vmatpush1.msra.mxu0 0.0
        %2210 = vmatprep.subr.mxu0 0.0
        %2211 = vmatpush1.msra.mxu0 0.0
        %2212 = vmatprep.subr.mxu0 0.0
        %2213 = vmatpush1.msra.mxu0 0.0
        %2214 = vmatprep.subr.mxu0 0.0
        %2215 = vmatpush1.msra.mxu0 0.0
        %2216 = vmatprep.subr.mxu0 0.0
        %2217 = vmatpush1.msra.mxu0 0.0
        %2218 = vmatprep.subr.mxu0 0.0
        %2219 = vmatpush1.msra.mxu0 0.0
        %2220 = vmatprep.subr.mxu0 0.0
        %2221 = vmatpush1.msra.mxu0 0.0
        %2222 = vmatprep.subr.mxu0 0.0
        %2223 = vmatpush1.msra.mxu0 0.0
        %2224 = vmatprep.subr.mxu0 0.0
        %2225 = vmatpush1.msra.mxu0 0.0
        %2226 = vmatprep.subr.mxu0 0.0
        %2227 = vmatpush1.msra.mxu0 0.0
        %2228 = vmatprep.subr.mxu0 0.0
        %2229 = vmatpush1.msra.mxu0 0.0
        %2230 = vmatprep.subr.mxu0 0.0
        %2231 = vmatpush1.msra.mxu0 0.0
        %2232 = vmatprep.subr.mxu0 0.0
        %2233 = vmatpush1.msra.mxu0 0.0
        %2234 = vmatprep.subr.mxu0 0.0
        %2235 = vmatpush1.msra.mxu0 0.0
        %2236 = vmatprep.subr.mxu0 0.0
        %2237 = vmatpush1.msra.mxu0 0.0
        %2238 = vmatprep.subr.mxu0 0.0
        %2239 = vmatpush1.msra.mxu0 0.0
        %2240 = vmatprep.subr.mxu0 0.0
        %2241 = vmatpush1.msra.mxu0 0.0
        %2242 = vmatprep.subr.mxu0 0.0
        %2243 = vmatpush1.msra.mxu0 0.0
        %2244 = vmatprep.subr.mxu0 0.0
        %2245 = vmatpush1.msra.mxu0 0.0
        %2246 = vmatprep.subr.mxu0 0.0
        %2247 = vmatpush1.msra.mxu0 0.0
        %2248 = vmatprep.subr.mxu0 0.0
        %2249 = vmatpush1.msra.mxu0 0.0
        %2250 = vmatprep.mubr.f32.mxu0 0.0
        %2251 = vmatmul.mubr.f32.gmra.mrb[0].mxu0 %v2181
        %v2252 = vpop.f32.mrb[0].mxu0
        %v2253 = vadd.f32 0.0, %v2252
        %v2254 = vpop.f32.mrb[0].mxu0
        %2255 = vmatprep.mubr.f32.mxu0 0.0
        %2256 = vmatmul.mubr.f32.gmra.mrb[0].mxu0 %v2184
        %v2257 = vpop.f32.mrb[0].mxu0
        %v2258 = vadd.f32 0.0, %v2257
        %v2259 = vpop.f32.mrb[0].mxu0
        %2260 = vdwg.mxu0
        %2263 = vrot.lane.b32.xlu0 %v1319, 16
        %v2264 = vpop.permute.xlu0 %2263
        %2265 = vrot.lane.b32.xlu0 %v1324, 16
        %v2266 = vpop.permute.xlu0 %2265
        %2271 = vrot.lane.b32.xlu0 %v1786, 32
        %v2272 = vpop.permute.xlu0 %2271
        %2273 = vrot.lane.b32.xlu0 %v1791, 32
        %v2274 = vpop.permute.xlu0 %2273
        %2279 = vrot.lane.b32.xlu0 %v2253, 48
        %v2280 = vpop.permute.xlu0 %2279
        %2281 = vrot.lane.b32.xlu0 %v2258, 48
        %v2282 = vpop.permute.xlu0 %2281
        %v2285 = vsel %vm400, %v852, %v2264
        %v2286 = vsel %vm400, %v857, %v2266
        %vm2287 = vcmask 261120
        %v2288 = vsel %vm2287, %v2285, %v2272
        %v2289 = vsel %vm2287, %v2286, %v2274
        %vm2290 = vcmask 392192
        %v2291 = vsel %vm2290, %v2288, %v2280
        %v2292 = vsel %vm2290, %v2289, %v2282
        %v2293 = vld [vmem:[%s4] sm:$0xff]
        %v2294 = vld [vmem:[%s4 + $0x8] sm:$0xff]
        %v2295 = vld [vmem:[%s4 + $0x10] sm:$0xff]
        %v2296 = vld [vmem:[%s4 + $0x18] sm:$0xff]
        %v2297 = vld [vmem:[%s4 + $0x20] sm:$0xff]
        %v2298 = vld [vmem:[%s4 + $0x28] sm:$0xff]
        %v2299 = vld [vmem:[%s4 + $0x30] sm:$0xff]
        %v2300 = vld [vmem:[%s4 + $0x38] sm:$0xff]
        %v2301 = vld [vmem:[%s5] sm:$0x1]
        %v2303 = vlaneseq
        %v2304 = vshrl.u32 %v2303, 7
        %v2305 = vsub.s32 0, %v2304
        %v2306 = vrot.slane %v2301, %v2305
        %v2309 = vsel %vm303, %v2291, 0
        %v2312 = vsel %vm303, %v2292, 0
        %2314 = vmatprep.subr.mxu0 0.0
        %2315 = vmatpush1.msra.mxu0 %v2293
        %2316 = vmatprep.subr.mxu0 0.0
        %2317 = vmatpush1.msra.mxu0 %v2294
        %2318 = vmatprep.subr.mxu0 0.0
        %2319 = vmatpush1.msra.mxu0 %v2295
        %2320 = vmatprep.subr.mxu0 0.0
        %2321 = vmatpush1.msra.mxu0 %v2296
        %2322 = vmatprep.subr.mxu0 0.0
        %2323 = vmatpush1.msra.mxu0 %v2297
        %2324 = vmatprep.subr.mxu0 0.0
        %2325 = vmatpush1.msra.mxu0 %v2298
        %2326 = vmatprep.subr.mxu0 0.0
        %2327 = vmatpush1.msra.mxu0 %v2299
        %2328 = vmatprep.subr.mxu0 0.0
        %2329 = vmatpush1.msra.mxu0 %v2300
        %2330 = vmatprep.subr.mxu0 0.0
        %2331 = vmatpush1.msra.mxu0 0.0
        %2332 = vmatprep.subr.mxu0 0.0
        %2333 = vmatpush1.msra.mxu0 0.0
        %2334 = vmatprep.subr.mxu0 0.0
        %2335 = vmatpush1.msra.mxu0 0.0
        %2336 = vmatprep.subr.mxu0 0.0
        %2337 = vmatpush1.msra.mxu0 0.0
        %2338 = vmatprep.subr.mxu0 0.0
        %2339 = vmatpush1.msra.mxu0 0.0
        %2340 = vmatprep.subr.mxu0 0.0
        %2341 = vmatpush1.msra.mxu0 0.0
        %2342 = vmatprep.subr.mxu0 0.0
        %2343 = vmatpush1.msra.mxu0 0.0
        %2344 = vmatprep.subr.mxu0 0.0
        %2345 = vmatpush1.msra.mxu0 0.0
        %2346 = vmatprep.subr.mxu0 0.0
        %2347 = vmatpush1.msra.mxu0 0.0
        %2348 = vmatprep.subr.mxu0 0.0
        %2349 = vmatpush1.msra.mxu0 0.0
        %2350 = vmatprep.subr.mxu0 0.0
        %2351 = vmatpush1.msra.mxu0 0.0
        %2352 = vmatprep.subr.mxu0 0.0
        %2353 = vmatpush1.msra.mxu0 0.0
        %2354 = vmatprep.subr.mxu0 0.0
        %2355 = vmatpush1.msra.mxu0 0.0
        %2356 = vmatprep.subr.mxu0 0.0
        %2357 = vmatpush1.msra.mxu0 0.0
        %2358 = vmatprep.subr.mxu0 0.0
        %2359 = vmatpush1.msra.mxu0 0.0
        %2360 = vmatprep.subr.mxu0 0.0
        %2361 = vmatpush1.msra.mxu0 0.0
        %2362 = vmatprep.subr.mxu0 0.0
        %2363 = vmatpush1.msra.mxu0 0.0
        %2364 = vmatprep.subr.mxu0 0.0
        %2365 = vmatpush1.msra.mxu0 0.0
        %2366 = vmatprep.subr.mxu0 0.0
        %2367 = vmatpush1.msra.mxu0 0.0
        %2368 = vmatprep.subr.mxu0 0.0
        %2369 = vmatpush1.msra.mxu0 0.0
        %2370 = vmatprep.subr.mxu0 0.0
        %2371 = vmatpush1.msra.mxu0 0.0
        %2372 = vmatprep.subr.mxu0 0.0
        %2373 = vmatpush1.msra.mxu0 0.0
        %2374 = vmatprep.subr.mxu0 0.0
        %2375 = vmatpush1.msra.mxu0 0.0
        %2376 = vmatprep.subr.mxu0 0.0
        %2377 = vmatpush1.msra.mxu0 0.0
        %2378 = vmatprep.mubr.f32.mxu0 0.0
        %2379 = vmatmul.mubr.f32.gmra.mrb[0].mxu0 %v2309
        %v2380 = vpop.f32.mrb[0].mxu0
        %v2381 = vadd.f32 %v2306, %v2380
        %v2382 = vpop.f32.mrb[0].mxu0
        %2383 = vmatprep.mubr.f32.mxu0 0.0
        %2384 = vmatmul.mubr.f32.gmra.mrb[0].mxu0 %v2312
        %v2385 = vpop.f32.mrb[0].mxu0
        %v2386 = vadd.f32 %v2306, %v2385
        %v2387 = vpop.f32.mrb[0].mxu0
        %2388 = vdwg.mxu0
        %2389 = vst.msk [vmem:[%s284] sm:$0xff] %vm303, %v2381
        %2390 = vst.msk [vmem:[%s284 + $0x8] sm:$0xff] %vm303, %v2386
        %s2391 = sand.u32 %s163, 1
        %s2392 = scalar_lea.sflag [#allocation4], %s2391
        %s2393 = sand.u32 %s163, 1
        %s2394 = smul.addr %s2393, 16
        %s2395 = scalar_lea.vmem [#allocation7], %s2394
        // Predicated region
        $region53: #{tpu_custom_call.1} parent=43 // pred_check
          %p2396 = pneg %p173
        $region54: #{tpu_custom_call.1} parent=43 // pred_check_branch
          %2398 = sbr.rel (%p2396) target = $region56
        $region55: #{tpu_custom_call.1} parent=43 // pred_region
          %s2400 = ssub.s32 256, 256
          %2401 = vsyncadd %s2392, %s2400
          %s2402 = smul.addr %s24, 2
          %s2403 = smul.addr %s2402, 128
          %s2404 = scalar_lea.hbm %s6, %s2403
          %s2405 = sshll.u32 %s2395, 4
          %s2406 = int_to_ptr.vmem [resolvable:$true] %s2405
          %2411 = dma.vmem_to_hbm [thread:$0]  %s2406, 256, %s2404, %s2392, 128, 128, 8
        $region56: #{tpu_custom_call.1} parent=43 // pred_fallthru
          _
      $region44: #{tpu_custom_call.1} parent=5 // pred_fallthru
        _
      %p2412 = scmp.le.s32.totalorder 2, %s19
      // Predicated region
      $region57: #{tpu_custom_call.1} parent=5 // pred_check
        %p2413 = pneg %p2412
      $region58: #{tpu_custom_call.1} parent=5 // pred_check_branch
        %2415 = sbr.rel (%p2413) target = $region60
      $region59: #{tpu_custom_call.1} parent=5 // pred_region
        %s2416 = ssub.s32 %s19, 2
        // Predicated region
        $region61: #{tpu_custom_call.1} parent=59 // pred_check
          %p2417 = pneg %p179
        $region62: #{tpu_custom_call.1} parent=59 // pred_check_branch
          %2419 = sbr.rel (%p2417) target = $region64
        $region63: #{tpu_custom_call.1} parent=59 // pred_region
          %s2420 = sand.u32 %s164, 1
          %s2421 = scalar_lea.sflag [#allocation4], %s2420
          %s2422 = sand.u32 %s164, 1
          %s2423 = smul.addr %s2422, 16
          %s2424 = scalar_lea.vmem [#allocation7], %s2423
          %2425 = dma.done %s2421, 256
        $region64: #{tpu_custom_call.1} parent=59 // pred_fallthru
          _
      $region60: #{tpu_custom_call.1} parent=5 // pred_fallthru
        _
    $region6: #{tpu_custom_call.1} parent=1 // loop_footer
      %s23 = sadd.s32 1, %s19
    $region7: #{tpu_custom_call.1} parent=1 // loop_footer_branch
      %18 = sbr.rel target = $region3
    $region8: #{tpu_custom_call.1} parent=1 // loop_exit
      _
    %2426 = vsyncpa [#allocation3], 1
    %s2427 = scalar_lea.sflag [#allocation3], 1
    %2428 = vsyncpa %s2427, 1
    %2429 = vsyncpa [#allocation6], 1
    %2430 = vsyncpa [#allocation4], 1
    %s2431 = scalar_lea.sflag [#allocation4], 1
    %2432 = vsyncpa %s2431, 1

</llo_original>
